<compile_context>
chip_gen: v6e
topology: v6e:2x2x1
jax: 0.10.0
libtpu: 0.0.40
codegen_flags: <defaults>
</compile_context>

<pallas_src>
import functools

import jax
import jax.numpy as jnp
from jax.experimental import pallas as pl
from jax.experimental.pallas import tpu as pltpu

INPUT_SIZE_M = 120
INPUT_SIZE_P = 260
INPUT_SIZE_C = 220
H1, H2, H3 = 500, 100, 10

# Lane-aligned (padded) sizes.
M_PAD, P_PAD, C_PAD = 128, 384, 256
H1_PAD, H2_PAD, H3_PAD = 512, 128, 128


def _round_up(n, m):
    return (n + m - 1) // m * m


def _cdiv(a, b):
    return -(-a // b)


def _dnn_feature_dot_kernel(xm_ref, xp_ref, xc_ref,
                            wm1_ref, bm1_ref,
                            wp1_ref, bp1_ref,
                            wc1_ref, bc1_ref,
                            w2_ref, b2_ref,
                            w3_ref, b3_ref,
                            fc_ref,
                            out_ref):
    def relu_dot(x, w_ref, b_ref):
        h = jnp.dot(x, w_ref[...], preferred_element_type=jnp.float32)
        return jnp.maximum(h + b_ref[...], 0.0)

    def branch(x_ref, w1_ref, b1_ref):
        # Shared fc_2 / fc_3 weights are VMEM-resident (constant index_maps),
        # so running them per branch does the same MXU work as a stacked
        # matmul but avoids materializing a concatenated [3Bt, 512] slab.
        h = relu_dot(x_ref[...], w1_ref, b1_ref)                  # [Bt, 512] f32
        h = relu_dot(h.astype(jnp.bfloat16), w2_ref, b2_ref)      # [Bt, 128] f32
        h = relu_dot(h.astype(jnp.bfloat16), w3_ref, b3_ref)      # [Bt, 128] f32
        return h

    m = branch(xm_ref, wm1_ref, bm1_ref)
    p = branch(xp_ref, wp1_ref, bp1_ref)
    c = branch(xc_ref, wc1_ref, bc1_ref)

    # Padded H3 lanes are exactly zero (zero weight/bias padding + ReLU), so
    # summing all 128 lanes equals the 10-lane dot products.
    d1 = jnp.sum(m * p, axis=-1, keepdims=True)   # [Bt, 1]
    d2 = jnp.sum(p * c, axis=-1, keepdims=True)
    d3 = jnp.sum(c * m, axis=-1, keepdims=True)

    # Final "Linear(3,1)" as a pure VPU weighted sum (scalars from SMEM).
    out = d1 * fc_ref[0] + d2 * fc_ref[1] + d3 * fc_ref[2] + fc_ref[3]   # [Bt, 1]
    out_ref[...] = out.astype(out_ref.dtype)


@functools.partial(jax.jit, static_argnames=("block_b",))
def dnn_feature_dot(x, params, block_b=1024):
    """x: [B, 600] float32 -> [B, 1] float32.

    block_b: max batch tile. Default 1024 fits v7x's 64 MiB VMEM; v5e/v6e
    (128 MiB VMEM) may use block_b=2048 to further amortize per-step overhead.
    """
    B = x.shape[0]
    B8 = _round_up(max(B, 1), 8)

    # Choose the tile count first: at least 2 and even so both v7x TensorCores
    # get work; Bt ~= ceil(B8/num_tiles) rounded to 8 so padding stays small.
    num_tiles = max(2, _cdiv(B8, block_b))
    num_tiles = _round_up(num_tiles, 2)
    Bt = _round_up(_cdiv(B8, num_tiles), 8)
    B_pad = num_tiles * Bt

    f32, bf16 = jnp.float32, jnp.bfloat16

    def pad2(a, rows, cols, dtype):
        return jnp.pad(a, ((0, rows - a.shape[0]), (0, cols - a.shape[1]))).astype(dtype)

    # --- wrapper-side layout plumbing (split / pad / cast) ---
    # Jitted together with the pallas_call so XLA fuses this into one pass.
    x = x.astype(f32)
    xm = pad2(x[:, :INPUT_SIZE_M], B_pad, M_PAD, bf16)
    xp = pad2(x[:, INPUT_SIZE_M:INPUT_SIZE_M + INPUT_SIZE_P], B_pad, P_PAD, bf16)
    xc = pad2(x[:, INPUT_SIZE_M + INPUT_SIZE_P:
                INPUT_SIZE_M + INPUT_SIZE_P + INPUT_SIZE_C], B_pad, C_PAD, bf16)

    wm1 = pad2(params["wm1"], M_PAD, H1_PAD, bf16)
    bm1 = pad2(params["bm1"], 1, H1_PAD, f32)
    wp1 = pad2(params["wp1"], P_PAD, H1_PAD, bf16)
    bp1 = pad2(params["bp1"], 1, H1_PAD, f32)
    wc1 = pad2(params["wc1"], C_PAD, H1_PAD, bf16)
    bc1 = pad2(params["bc1"], 1, H1_PAD, f32)
    w2 = pad2(params["w2"], H1_PAD, H2_PAD, bf16)
    b2 = pad2(params["b2"], 1, H2_PAD, f32)
    w3 = pad2(params["w3"], H2_PAD, H3_PAD, bf16)
    b3 = pad2(params["b3"], 1, H3_PAD, f32)
    # [w0, w1, w2, bias] scalars for the final projection, kept in SMEM.
    fc = jnp.concatenate([params["wfc"][:, 0], params["bfc"][0]]).astype(f32)  # [4]

    const = lambda shape: pl.BlockSpec(shape, lambda i: (0, 0))
    in_specs = [
        pl.BlockSpec((Bt, M_PAD), lambda i: (i, 0)),   # xm
        pl.BlockSpec((Bt, P_PAD), lambda i: (i, 0)),   # xp
        pl.BlockSpec((Bt, C_PAD), lambda i: (i, 0)),   # xc
        const((M_PAD, H1_PAD)), const((1, H1_PAD)),    # wm1, bm1
        const((P_PAD, H1_PAD)), const((1, H1_PAD)),    # wp1, bp1
        const((C_PAD, H1_PAD)), const((1, H1_PAD)),    # wc1, bc1
        const((H1_PAD, H2_PAD)), const((1, H2_PAD)),   # w2, b2
        const((H2_PAD, H3_PAD)), const((1, H3_PAD)),   # w3, b3
        pl.BlockSpec(memory_space=pltpu.MemorySpace.SMEM),  # fc scalars
    ]

    out = pl.pallas_call(
        _dnn_feature_dot_kernel,
        out_shape=jax.ShapeDtypeStruct((B_pad, 1), jnp.float32),
        grid=(num_tiles,),
        in_specs=in_specs,
        out_specs=pl.BlockSpec((Bt, 1), lambda i: (i, 0)),
        compiler_params=pltpu.CompilerParams(
            dimension_semantics=("parallel",),
            vmem_limit_bytes=32 * 1024 * 1024),
    )(xm, xp, xc, wm1, bm1, wp1, bp1, wc1, bc1, w2, b2, w3, b3, fc)

    return out[:B]   # contiguous slice; no column gather


def _linear_params(key, fan_in, fan_out):
    # PyTorch nn.Linear default init: U(-1/sqrt(fan_in), 1/sqrt(fan_in)).
    kw, kb = jax.random.split(key)
    bound = 1.0 / jnp.sqrt(float(fan_in))
    w = jax.random.uniform(kw, (fan_in, fan_out), jnp.float32, -bound, bound)
    b = jax.random.uniform(kb, (1, fan_out), jnp.float32, -bound, bound)
    return w, b


def init_params(key):
    ks = jax.random.split(key, 6)
    wm1, bm1 = _linear_params(ks[0], INPUT_SIZE_M, H1)
    wp1, bp1 = _linear_params(ks[1], INPUT_SIZE_P, H1)
    wc1, bc1 = _linear_params(ks[2], INPUT_SIZE_C, H1)
    w2, b2 = _linear_params(ks[3], H1, H2)
    w3, b3 = _linear_params(ks[4], H2, H3)
    # Final projection: see TODO(synk) above — effectively Linear(3, 1).
    wfc, bfc = _linear_params(ks[5], 3, 1)
    return dict(wm1=wm1, bm1=bm1, wp1=wp1, bp1=bp1, wc1=wc1, bc1=bc1,
                w2=w2, b2=b2, w3=w3, b3=b3, wfc=wfc, bfc=bfc)


def reference(x, p):
    """Pure-JAX reference mirroring the kernel's bf16 operand rounding."""
    bf = lambda a: a.astype(jnp.bfloat16)

    def mm(a, w):
        return jnp.dot(bf(a), bf(w), preferred_element_type=jnp.float32)

    def branch(xs, w1, b1):
        h = jax.nn.relu(mm(xs, w1) + b1)
        h = jax.nn.relu(mm(h, p["w2"]) + p["b2"])
        h = jax.nn.relu(mm(h, p["w3"]) + p["b3"])
        return h

    m = branch(x[:, :INPUT_SIZE_M], p["wm1"], p["bm1"])
    pr = branch(x[:, INPUT_SIZE_M:INPUT_SIZE_M + INPUT_SIZE_P], p["wp1"], p["bp1"])
    c = branch(x[:, INPUT_SIZE_M + INPUT_SIZE_P:], p["wc1"], p["bc1"])
    d1 = jnp.sum(m * pr, axis=-1, keepdims=True)
    d2 = jnp.sum(pr * c, axis=-1, keepdims=True)
    d3 = jnp.sum(c * m, axis=-1, keepdims=True)
    return d1 * p["wfc"][0, 0] + d2 * p["wfc"][1, 0] + d3 * p["wfc"][2, 0] + p["bfc"][0, 0]


if __name__ == "__main__":
    key = jax.random.PRNGKey(0)
    kx, kp = jax.random.split(key)
    B = 24
    x = jax.random.normal(kx, (B, INPUT_SIZE_M + INPUT_SIZE_P + INPUT_SIZE_C),
                          dtype=jnp.float32)
    params = init_params(kp)
    ref = reference(x, params)

    # Small tile -> 4 grid steps: exercises the pipelined multi-tile path.
    out_small = jax.block_until_ready(dnn_feature_dot(x, params, block_b=8))
    assert out_small.shape == (B, 1), out_small.shape
    assert jnp.allclose(out_small, ref, atol=5e-3, rtol=5e-3), (out_small, ref)

    # Default tile (-> 2 tiles here): exercises the production tiling path.
    out = jax.block_until_ready(dnn_feature_dot(x, params))
    assert out.shape == (B, 1), out.shape
    assert jnp.allclose(out, ref, atol=5e-3, rtol=5e-3), (out, ref)

    print("KERNEL_OK")
</pallas_src>

<mosaic_0001>
module attributes {stable_mosaic.version = 11 : i64} {
  func.func @_dnn_feature_dot_kernel(%arg0: i32, %arg1: memref<8x128xbf16, #tpu.memory_space<vmem>>, %arg2: memref<8x384xbf16, #tpu.memory_space<vmem>>, %arg3: memref<8x256xbf16, #tpu.memory_space<vmem>>, %arg4: memref<128x512xbf16, #tpu.memory_space<vmem>>, %arg5: memref<1x512xf32, #tpu.memory_space<vmem>>, %arg6: memref<384x512xbf16, #tpu.memory_space<vmem>>, %arg7: memref<1x512xf32, #tpu.memory_space<vmem>>, %arg8: memref<256x512xbf16, #tpu.memory_space<vmem>>, %arg9: memref<1x512xf32, #tpu.memory_space<vmem>>, %arg10: memref<512x128xbf16, #tpu.memory_space<vmem>>, %arg11: memref<1x128xf32, #tpu.memory_space<vmem>>, %arg12: memref<128x128xbf16, #tpu.memory_space<vmem>>, %arg13: memref<1x128xf32, #tpu.memory_space<vmem>>, %arg14: memref<4xf32, #tpu.memory_space<smem>>, %arg15: memref<8x1xf32, #tpu.memory_space<vmem>>) attributes {dimension_semantics = [#tpu.dimension_semantics<parallel>], iteration_bounds = array<i64: 4>, scalar_prefetch = 0 : i64, scratch_operands = 0 : i64, tpu.core_type = #tpu.core_type<tc>, window_params = [{transform_indices = @transform_0, window_bounds = array<i64: 8, 128>}, {transform_indices = @transform_1, window_bounds = array<i64: 8, 384>}, {transform_indices = @transform_2, window_bounds = array<i64: 8, 256>}, {pipeline_mode = #tpu.pipeline_mode<synchronous>, transform_indices = @transform_3, window_bounds = array<i64: 128, 512>}, {pipeline_mode = #tpu.pipeline_mode<synchronous>, transform_indices = @transform_4, window_bounds = array<i64: 1, 512>}, {pipeline_mode = #tpu.pipeline_mode<synchronous>, transform_indices = @transform_5, window_bounds = array<i64: 384, 512>}, {pipeline_mode = #tpu.pipeline_mode<synchronous>, transform_indices = @transform_6, window_bounds = array<i64: 1, 512>}, {pipeline_mode = #tpu.pipeline_mode<synchronous>, transform_indices = @transform_7, window_bounds = array<i64: 256, 512>}, {pipeline_mode = #tpu.pipeline_mode<synchronous>, transform_indices = @transform_8, window_bounds = array<i64: 1, 512>}, {pipeline_mode = #tpu.pipeline_mode<synchronous>, transform_indices = @transform_9, window_bounds = array<i64: 512, 128>}, {pipeline_mode = #tpu.pipeline_mode<synchronous>, transform_indices = @transform_10, window_bounds = array<i64: 1, 128>}, {pipeline_mode = #tpu.pipeline_mode<synchronous>, transform_indices = @transform_11, window_bounds = array<i64: 128, 128>}, {pipeline_mode = #tpu.pipeline_mode<synchronous>, transform_indices = @transform_12, window_bounds = array<i64: 1, 128>}, {transform_indices = @transform_13, window_bounds = array<i64: 4>}, {transform_indices = @transform_14, window_bounds = array<i64: 8, 1>}]} {
    %c0 = arith.constant 0 : index
    %c0_0 = arith.constant 0 : index
    %0 = vector.load %arg1[%c0, %c0_0] : memref<8x128xbf16, #tpu.memory_space<vmem>>, vector<8x128xbf16>
    %c0_1 = arith.constant 0 : index
    %c0_2 = arith.constant 0 : index
    %1 = vector.load %arg4[%c0_1, %c0_2] : memref<128x512xbf16, #tpu.memory_space<vmem>>, vector<128x512xbf16>
    %cst = arith.constant dense<0.000000e+00> : vector<8x512xf32>
    %2 = tpu.matmul %0, %1, %cst {dimension_numbers = #tpu.dot_dimension_numbers<[1], [0], [0], [1], [0, 0, 1, 1], [], []>} : vector<8x128xbf16>, vector<128x512xbf16>, vector<8x512xf32> -> vector<8x512xf32>
    %c0_3 = arith.constant 0 : index
    %c0_4 = arith.constant 0 : index
    %3 = vector.load %arg5[%c0_3, %c0_4] : memref<1x512xf32, #tpu.memory_space<vmem>>, vector<1x512xf32>
    %4 = vector.broadcast %3 : vector<1x512xf32> to vector<8x512xf32>
    %5 = arith.addf %2, %4 : vector<8x512xf32>
    %cst_5 = arith.constant 0.000000e+00 : f32
    %6 = vector.broadcast %cst_5 : f32 to vector<8x512xf32>
    %7 = arith.maximumf %5, %6 : vector<8x512xf32>
    %8 = arith.truncf %7 : vector<8x512xf32> to vector<8x512xbf16>
    %c0_6 = arith.constant 0 : index
    %c0_7 = arith.constant 0 : index
    %9 = vector.load %arg10[%c0_6, %c0_7] : memref<512x128xbf16, #tpu.memory_space<vmem>>, vector<512x128xbf16>
    %cst_8 = arith.constant dense<0.000000e+00> : vector<8x128xf32>
    %10 = tpu.matmul %8, %9, %cst_8 {dimension_numbers = #tpu.dot_dimension_numbers<[1], [0], [0], [1], [0, 0, 1, 1], [], []>} : vector<8x512xbf16>, vector<512x128xbf16>, vector<8x128xf32> -> vector<8x128xf32>
    %c0_9 = arith.constant 0 : index
    %c0_10 = arith.constant 0 : index
    %11 = vector.load %arg11[%c0_9, %c0_10] : memref<1x128xf32, #tpu.memory_space<vmem>>, vector<1x128xf32>
    %12 = vector.broadcast %11 : vector<1x128xf32> to vector<8x128xf32>
    %13 = arith.addf %10, %12 : vector<8x128xf32>
    %cst_11 = arith.constant 0.000000e+00 : f32
    %14 = vector.broadcast %cst_11 : f32 to vector<8x128xf32>
    %15 = arith.maximumf %13, %14 : vector<8x128xf32>
    %16 = arith.truncf %15 : vector<8x128xf32> to vector<8x128xbf16>
    %c0_12 = arith.constant 0 : index
    %c0_13 = arith.constant 0 : index
    %17 = vector.load %arg12[%c0_12, %c0_13] : memref<128x128xbf16, #tpu.memory_space<vmem>>, vector<128x128xbf16>
    %cst_14 = arith.constant dense<0.000000e+00> : vector<8x128xf32>
    %18 = tpu.matmul %16, %17, %cst_14 {dimension_numbers = #tpu.dot_dimension_numbers<[1], [0], [0], [1], [0, 0, 1, 1], [], []>} : vector<8x128xbf16>, vector<128x128xbf16>, vector<8x128xf32> -> vector<8x128xf32>
    %c0_15 = arith.constant 0 : index
    %c0_16 = arith.constant 0 : index
    %19 = vector.load %arg13[%c0_15, %c0_16] : memref<1x128xf32, #tpu.memory_space<vmem>>, vector<1x128xf32>
    %20 = vector.broadcast %19 : vector<1x128xf32> to vector<8x128xf32>
    %21 = arith.addf %18, %20 : vector<8x128xf32>
    %cst_17 = arith.constant 0.000000e+00 : f32
    %22 = vector.broadcast %cst_17 : f32 to vector<8x128xf32>
    %23 = arith.maximumf %21, %22 : vector<8x128xf32>
    %c0_18 = arith.constant 0 : index
    %c0_19 = arith.constant 0 : index
    %24 = vector.load %arg2[%c0_18, %c0_19] : memref<8x384xbf16, #tpu.memory_space<vmem>>, vector<8x384xbf16>
    %c0_20 = arith.constant 0 : index
    %c0_21 = arith.constant 0 : index
    %25 = vector.load %arg6[%c0_20, %c0_21] : memref<384x512xbf16, #tpu.memory_space<vmem>>, vector<384x512xbf16>
    %cst_22 = arith.constant dense<0.000000e+00> : vector<8x512xf32>
    %26 = tpu.matmul %24, %25, %cst_22 {dimension_numbers = #tpu.dot_dimension_numbers<[1], [0], [0], [1], [0, 0, 1, 1], [], []>} : vector<8x384xbf16>, vector<384x512xbf16>, vector<8x512xf32> -> vector<8x512xf32>
    %c0_23 = arith.constant 0 : index
    %c0_24 = arith.constant 0 : index
    %27 = vector.load %arg7[%c0_23, %c0_24] : memref<1x512xf32, #tpu.memory_space<vmem>>, vector<1x512xf32>
    %28 = vector.broadcast %27 : vector<1x512xf32> to vector<8x512xf32>
    %29 = arith.addf %26, %28 : vector<8x512xf32>
    %cst_25 = arith.constant 0.000000e+00 : f32
    %30 = vector.broadcast %cst_25 : f32 to vector<8x512xf32>
    %31 = arith.maximumf %29, %30 : vector<8x512xf32>
    %32 = arith.truncf %31 : vector<8x512xf32> to vector<8x512xbf16>
    %c0_26 = arith.constant 0 : index
    %c0_27 = arith.constant 0 : index
    %33 = vector.load %arg10[%c0_26, %c0_27] : memref<512x128xbf16, #tpu.memory_space<vmem>>, vector<512x128xbf16>
    %cst_28 = arith.constant dense<0.000000e+00> : vector<8x128xf32>
    %34 = tpu.matmul %32, %33, %cst_28 {dimension_numbers = #tpu.dot_dimension_numbers<[1], [0], [0], [1], [0, 0, 1, 1], [], []>} : vector<8x512xbf16>, vector<512x128xbf16>, vector<8x128xf32> -> vector<8x128xf32>
    %c0_29 = arith.constant 0 : index
    %c0_30 = arith.constant 0 : index
    %35 = vector.load %arg11[%c0_29, %c0_30] : memref<1x128xf32, #tpu.memory_space<vmem>>, vector<1x128xf32>
    %36 = vector.broadcast %35 : vector<1x128xf32> to vector<8x128xf32>
    %37 = arith.addf %34, %36 : vector<8x128xf32>
    %cst_31 = arith.constant 0.000000e+00 : f32
    %38 = vector.broadcast %cst_31 : f32 to vector<8x128xf32>
    %39 = arith.maximumf %37, %38 : vector<8x128xf32>
    %40 = arith.truncf %39 : vector<8x128xf32> to vector<8x128xbf16>
    %c0_32 = arith.constant 0 : index
    %c0_33 = arith.constant 0 : index
    %41 = vector.load %arg12[%c0_32, %c0_33] : memref<128x128xbf16, #tpu.memory_space<vmem>>, vector<128x128xbf16>
    %cst_34 = arith.constant dense<0.000000e+00> : vector<8x128xf32>
    %42 = tpu.matmul %40, %41, %cst_34 {dimension_numbers = #tpu.dot_dimension_numbers<[1], [0], [0], [1], [0, 0, 1, 1], [], []>} : vector<8x128xbf16>, vector<128x128xbf16>, vector<8x128xf32> -> vector<8x128xf32>
    %c0_35 = arith.constant 0 : index
    %c0_36 = arith.constant 0 : index
    %43 = vector.load %arg13[%c0_35, %c0_36] : memref<1x128xf32, #tpu.memory_space<vmem>>, vector<1x128xf32>
    %44 = vector.broadcast %43 : vector<1x128xf32> to vector<8x128xf32>
    %45 = arith.addf %42, %44 : vector<8x128xf32>
    %cst_37 = arith.constant 0.000000e+00 : f32
    %46 = vector.broadcast %cst_37 : f32 to vector<8x128xf32>
    %47 = arith.maximumf %45, %46 : vector<8x128xf32>
    %c0_38 = arith.constant 0 : index
    %c0_39 = arith.constant 0 : index
    %48 = vector.load %arg3[%c0_38, %c0_39] : memref<8x256xbf16, #tpu.memory_space<vmem>>, vector<8x256xbf16>
    %c0_40 = arith.constant 0 : index
    %c0_41 = arith.constant 0 : index
    %49 = vector.load %arg8[%c0_40, %c0_41] : memref<256x512xbf16, #tpu.memory_space<vmem>>, vector<256x512xbf16>
    %cst_42 = arith.constant dense<0.000000e+00> : vector<8x512xf32>
    %50 = tpu.matmul %48, %49, %cst_42 {dimension_numbers = #tpu.dot_dimension_numbers<[1], [0], [0], [1], [0, 0, 1, 1], [], []>} : vector<8x256xbf16>, vector<256x512xbf16>, vector<8x512xf32> -> vector<8x512xf32>
    %c0_43 = arith.constant 0 : index
    %c0_44 = arith.constant 0 : index
    %51 = vector.load %arg9[%c0_43, %c0_44] : memref<1x512xf32, #tpu.memory_space<vmem>>, vector<1x512xf32>
    %52 = vector.broadcast %51 : vector<1x512xf32> to vector<8x512xf32>
    %53 = arith.addf %50, %52 : vector<8x512xf32>
    %cst_45 = arith.constant 0.000000e+00 : f32
    %54 = vector.broadcast %cst_45 : f32 to vector<8x512xf32>
    %55 = arith.maximumf %53, %54 : vector<8x512xf32>
    %56 = arith.truncf %55 : vector<8x512xf32> to vector<8x512xbf16>
    %c0_46 = arith.constant 0 : index
    %c0_47 = arith.constant 0 : index
    %57 = vector.load %arg10[%c0_46, %c0_47] : memref<512x128xbf16, #tpu.memory_space<vmem>>, vector<512x128xbf16>
    %cst_48 = arith.constant dense<0.000000e+00> : vector<8x128xf32>
    %58 = tpu.matmul %56, %57, %cst_48 {dimension_numbers = #tpu.dot_dimension_numbers<[1], [0], [0], [1], [0, 0, 1, 1], [], []>} : vector<8x512xbf16>, vector<512x128xbf16>, vector<8x128xf32> -> vector<8x128xf32>
    %c0_49 = arith.constant 0 : index
    %c0_50 = arith.constant 0 : index
    %59 = vector.load %arg11[%c0_49, %c0_50] : memref<1x128xf32, #tpu.memory_space<vmem>>, vector<1x128xf32>
    %60 = vector.broadcast %59 : vector<1x128xf32> to vector<8x128xf32>
    %61 = arith.addf %58, %60 : vector<8x128xf32>
    %cst_51 = arith.constant 0.000000e+00 : f32
    %62 = vector.broadcast %cst_51 : f32 to vector<8x128xf32>
    %63 = arith.maximumf %61, %62 : vector<8x128xf32>
    %64 = arith.truncf %63 : vector<8x128xf32> to vector<8x128xbf16>
    %c0_52 = arith.constant 0 : index
    %c0_53 = arith.constant 0 : index
    %65 = vector.load %arg12[%c0_52, %c0_53] : memref<128x128xbf16, #tpu.memory_space<vmem>>, vector<128x128xbf16>
    %cst_54 = arith.constant dense<0.000000e+00> : vector<8x128xf32>
    %66 = tpu.matmul %64, %65, %cst_54 {dimension_numbers = #tpu.dot_dimension_numbers<[1], [0], [0], [1], [0, 0, 1, 1], [], []>} : vector<8x128xbf16>, vector<128x128xbf16>, vector<8x128xf32> -> vector<8x128xf32>
    %c0_55 = arith.constant 0 : index
    %c0_56 = arith.constant 0 : index
    %67 = vector.load %arg13[%c0_55, %c0_56] : memref<1x128xf32, #tpu.memory_space<vmem>>, vector<1x128xf32>
    %68 = vector.broadcast %67 : vector<1x128xf32> to vector<8x128xf32>
    %69 = arith.addf %66, %68 : vector<8x128xf32>
    %cst_57 = arith.constant 0.000000e+00 : f32
    %70 = vector.broadcast %cst_57 : f32 to vector<8x128xf32>
    %71 = arith.maximumf %69, %70 : vector<8x128xf32>
    %72 = arith.mulf %23, %47 : vector<8x128xf32>
    %cst_58 = arith.constant dense<0.000000e+00> : vector<8xf32>
    %73 = vector.multi_reduction <add>, %72, %cst_58 [1] : vector<8x128xf32> to vector<8xf32>
    %74 = vector.shape_cast %73 : vector<8xf32> to vector<8x1xf32>
    %75 = arith.mulf %47, %71 : vector<8x128xf32>
    %cst_59 = arith.constant dense<0.000000e+00> : vector<8xf32>
    %76 = vector.multi_reduction <add>, %75, %cst_59 [1] : vector<8x128xf32> to vector<8xf32>
    %77 = vector.shape_cast %76 : vector<8xf32> to vector<8x1xf32>
    %78 = arith.mulf %71, %23 : vector<8x128xf32>
    %cst_60 = arith.constant dense<0.000000e+00> : vector<8xf32>
    %79 = vector.multi_reduction <add>, %78, %cst_60 [1] : vector<8x128xf32> to vector<8xf32>
    %80 = vector.shape_cast %79 : vector<8xf32> to vector<8x1xf32>
    %c0_61 = arith.constant 0 : index
    %81 = memref.load %arg14[%c0_61] : memref<4xf32, #tpu.memory_space<smem>>
    %82 = vector.broadcast %81 : f32 to vector<8x1xf32>
    %83 = arith.mulf %74, %82 : vector<8x1xf32>
    %c1 = arith.constant 1 : index
    %84 = memref.load %arg14[%c1] : memref<4xf32, #tpu.memory_space<smem>>
    %85 = vector.broadcast %84 : f32 to vector<8x1xf32>
    %86 = arith.mulf %77, %85 : vector<8x1xf32>
    %87 = arith.addf %83, %86 : vector<8x1xf32>
    %c2 = arith.constant 2 : index
    %88 = memref.load %arg14[%c2] : memref<4xf32, #tpu.memory_space<smem>>
    %89 = vector.broadcast %88 : f32 to vector<8x1xf32>
    %90 = arith.mulf %80, %89 : vector<8x1xf32>
    %91 = arith.addf %87, %90 : vector<8x1xf32>
    %c3 = arith.constant 3 : index
    %92 = memref.load %arg14[%c3] : memref<4xf32, #tpu.memory_space<smem>>
    %93 = vector.broadcast %92 : f32 to vector<8x1xf32>
    %94 = arith.addf %91, %93 : vector<8x1xf32>
    %c0_62 = arith.constant 0 : index
    %c0_63 = arith.constant 0 : index
    %95 = vector.load %arg15[%c0_62, %c0_63] : memref<8x1xf32, #tpu.memory_space<vmem>>, vector<8x1xf32>
    tpu.vector_store %arg15[%c0_62, %c0_63], %94 {strides = array<i32>} : memref<8x1xf32, #tpu.memory_space<vmem>>, vector<8x1xf32>,
    return
  }
  func.func @transform_0(%arg0: i32) -> (i32, i32) {
    %c0_i32 = arith.constant 0 : i32
    %c0_i32_0 = arith.constant 0 : i32
    return %arg0, %c0_i32 : i32, i32
  }
  func.func @transform_1(%arg0: i32) -> (i32, i32) {
    %c0_i32 = arith.constant 0 : i32
    %c0_i32_0 = arith.constant 0 : i32
    return %arg0, %c0_i32 : i32, i32
  }
  func.func @transform_2(%arg0: i32) -> (i32, i32) {
    %c0_i32 = arith.constant 0 : i32
    %c0_i32_0 = arith.constant 0 : i32
    return %arg0, %c0_i32 : i32, i32
  }
  func.func @transform_3(%arg0: i32) -> (i32, i32) {
    %c0_i32 = arith.constant 0 : i32
    %c0_i32_0 = arith.constant 0 : i32
    %c0_i32_1 = arith.constant 0 : i32
    return %c0_i32, %c0_i32_0 : i32, i32
  }
  func.func @transform_4(%arg0: i32) -> (i32, i32) {
    %c0_i32 = arith.constant 0 : i32
    %c0_i32_0 = arith.constant 0 : i32
    %c0_i32_1 = arith.constant 0 : i32
    return %c0_i32, %c0_i32_0 : i32, i32
  }
  func.func @transform_5(%arg0: i32) -> (i32, i32) {
    %c0_i32 = arith.constant 0 : i32
    %c0_i32_0 = arith.constant 0 : i32
    %c0_i32_1 = arith.constant 0 : i32
    return %c0_i32, %c0_i32_0 : i32, i32
  }
  func.func @transform_6(%arg0: i32) -> (i32, i32) {
    %c0_i32 = arith.constant 0 : i32
    %c0_i32_0 = arith.constant 0 : i32
    %c0_i32_1 = arith.constant 0 : i32
    return %c0_i32, %c0_i32_0 : i32, i32
  }
  func.func @transform_7(%arg0: i32) -> (i32, i32) {
    %c0_i32 = arith.constant 0 : i32
    %c0_i32_0 = arith.constant 0 : i32
    %c0_i32_1 = arith.constant 0 : i32
    return %c0_i32, %c0_i32_0 : i32, i32
  }
  func.func @transform_8(%arg0: i32) -> (i32, i32) {
    %c0_i32 = arith.constant 0 : i32
    %c0_i32_0 = arith.constant 0 : i32
    %c0_i32_1 = arith.constant 0 : i32
    return %c0_i32, %c0_i32_0 : i32, i32
  }
  func.func @transform_9(%arg0: i32) -> (i32, i32) {
    %c0_i32 = arith.constant 0 : i32
    %c0_i32_0 = arith.constant 0 : i32
    %c0_i32_1 = arith.constant 0 : i32
    return %c0_i32, %c0_i32_0 : i32, i32
  }
  func.func @transform_10(%arg0: i32) -> (i32, i32) {
    %c0_i32 = arith.constant 0 : i32
    %c0_i32_0 = arith.constant 0 : i32
    %c0_i32_1 = arith.constant 0 : i32
    return %c0_i32, %c0_i32_0 : i32, i32
  }
  func.func @transform_11(%arg0: i32) -> (i32, i32) {
    %c0_i32 = arith.constant 0 : i32
    %c0_i32_0 = arith.constant 0 : i32
    %c0_i32_1 = arith.constant 0 : i32
    return %c0_i32, %c0_i32_0 : i32, i32
  }
  func.func @transform_12(%arg0: i32) -> (i32, i32) {
    %c0_i32 = arith.constant 0 : i32
    %c0_i32_0 = arith.constant 0 : i32
    %c0_i32_1 = arith.constant 0 : i32
    return %c0_i32, %c0_i32_0 : i32, i32
  }
  func.func @transform_13(%arg0: i32) -> i32 {
    %c0_i32 = arith.constant 0 : i32
    %c0_i32_0 = arith.constant 0 : i32
    return %c0_i32 : i32
  }
  func.func @transform_14(%arg0: i32) -> (i32, i32) {
    %c0_i32 = arith.constant 0 : i32
    %c0_i32_0 = arith.constant 0 : i32
    return %arg0, %c0_i32 : i32, i32
  }
}

</mosaic_0001>

<llo_original>
// kernel: dnn_feature_dot.1
$region0: #{dnn_feature_dot.1}
  #allocation0 [shape = 'u32[]', space=smem, size = 0x4, offset = 0x4, fixed_abs, tag = 'smem constant byte address 0x4 - core index']
  #allocation1 [shape = 'u32[144,128]{1,0:T(1,128)}', space=vmem, size = 0x12000, scoped, tag = 'internal scratch']
  %s0 = inlined_call_operand.vmem [shape: bf16[32,128], index: 0, kind: input, shape index: {}]
  %s1 = inlined_call_operand.vmem [shape: bf16[32,384], index: 1, kind: input, shape index: {}]
  %s2 = inlined_call_operand.vmem [shape: bf16[32,256], index: 2, kind: input, shape index: {}]
  %s3 = inlined_call_operand.vmem [shape: bf16[128,512], index: 3, kind: input, shape index: {}]
  %s4 = inlined_call_operand.vmem [shape: f32[1,512], index: 4, kind: input, shape index: {}]
  %s5 = inlined_call_operand.vmem [shape: bf16[384,512], index: 5, kind: input, shape index: {}]
  %s6 = inlined_call_operand.vmem [shape: f32[1,512], index: 6, kind: input, shape index: {}]
  %s7 = inlined_call_operand.vmem [shape: bf16[256,512], index: 7, kind: input, shape index: {}]
  %s8 = inlined_call_operand.vmem [shape: f32[1,512], index: 8, kind: input, shape index: {}]
  %s9 = inlined_call_operand.vmem [shape: bf16[512,128], index: 9, kind: input, shape index: {}]
  %s10 = inlined_call_operand.vmem [shape: f32[1,128], index: 10, kind: input, shape index: {}]
  %s11 = inlined_call_operand.vmem [shape: bf16[128,128], index: 11, kind: input, shape index: {}]
  %s12 = inlined_call_operand.vmem [shape: f32[1,128], index: 12, kind: input, shape index: {}]
  %s13 = inlined_call_operand.vmem [shape: f32[4], index: 13, kind: input, shape index: {}]
  %s14 = inlined_call_operand.vmem [shape: f32[32,1], index: 14, kind: output, shape index: {}]
  %s15 = sld [smem:[#allocation0]]
  $region93: #{dnn_feature_dot.1} parent=0
    _
  %s17 = ssub.s32 1, %s15
  %s18 = scalar_select 0, %s17, %s15
  $region1: #{dnn_feature_dot.1} parent=0
    #allocation2 [shape = 'u8[512]{0}', space=smem, size = 0x200, scoped, tag = 'input window, operand 13, single buffered']
    #allocation3 [shape = 's32[2]{0}', space=sflag, size = 0x8, scoped, tag = 'scoped memory for dnn_feature_dot.1']
    %19 = vsyncpa [#allocation3], 0
    loop: start=0, step=1, limit=6
    $region2: #{dnn_feature_dot.1} parent=1 // loop_pre_header
      _
    $region3: #{dnn_feature_dot.1} parent=1 // loop_header
      %s21 = sphi 0, %s25
      %p22 = scmp.ge.s32.totalorder %s21, 6
      %s31 = sphi 0, %s33
      %s34 = sphi 0, %s31
      %s35 = sphi 0, %s34
      %s51 = sphi 0, %s35
      %s57 = sphi 0, %s59
      %s60 = sphi 0, %s57
      %s61 = sphi 0, %s60
      %s77 = sphi 0, %s61
      %s83 = sphi 0, %s85
      %s86 = sphi 0, %s83
      %s87 = sphi 0, %s86
      %s103 = sphi 0, %s87
      %s107 = sphi 0, %s107
      %s109 = sphi 0, %s107
      %s110 = sphi 0, %s109
      %s124 = sphi 0, %s110
      %s128 = sphi 0, %s128
      %s130 = sphi 0, %s128
      %s131 = sphi 0, %s130
      %s145 = sphi 0, %s131
      %s149 = sphi 0, %s149
      %s151 = sphi 0, %s149
      %s152 = sphi 0, %s151
      %s166 = sphi 0, %s152
      %s170 = sphi 0, %s170
      %s172 = sphi 0, %s170
      %s173 = sphi 0, %s172
      %s187 = sphi 0, %s173
      %s191 = sphi 0, %s191
      %s193 = sphi 0, %s191
      %s194 = sphi 0, %s193
      %s208 = sphi 0, %s194
      %s212 = sphi 0, %s212
      %s214 = sphi 0, %s212
      %s215 = sphi 0, %s214
      %s229 = sphi 0, %s215
      %s233 = sphi 0, %s233
      %s235 = sphi 0, %s233
      %s236 = sphi 0, %s235
      %s250 = sphi 0, %s236
      %s254 = sphi 0, %s254
      %s256 = sphi 0, %s254
      %s257 = sphi 0, %s256
      %s271 = sphi 0, %s257
      %s275 = sphi 0, %s275
      %s277 = sphi 0, %s275
      %s278 = sphi 0, %s277
      %s292 = sphi 0, %s278
      %s296 = sphi 0, %s296
      %s298 = sphi 0, %s296
      %s299 = sphi 0, %s298
      %s313 = sphi 0, %s299
      %s317 = sphi 0, %s317
      %s319 = sphi 0, %s317
      %s320 = sphi 0, %s319
      %s334 = sphi 0, %s320
      %s340 = sphi 0, %s342
      %s343 = sphi 0, %s340
      %s344 = sphi 0, %s343
      %s360 = sphi 0, %s344
    $region4: #{dnn_feature_dot.1} parent=1 // loop_header_branch
      %24 = sbr.rel (%p22) target = $region8
    $region5: #{dnn_feature_dot.1} parent=1 // loop_body
      %s26 = ssub.s32 %s21, 1
      %s27 = ssub.s32 %s21, 2
      %s28 = sadd.s32 %s21, 1
      %s29 = ssub.s32 %s21, %s28
      %p30 = scmp.eq.s32.totalorder %s29, 0
      %s32 = sadd.s32 %s31, 1
      %s33 = scalar_select %p30, %s31, %s32
      %p36 = pneg %p30
      %p37 = scmp.eq.s32.totalorder %s21, 3
      %p38 = por %p36, %p37
      %p39 = scmp.ne.s32.totalorder %s31, %s34
      %p40 = scmp.eq.s32.totalorder %s21, 0
      %p41 = por %p39, %p40
      %p42 = scmp.ne.s32.totalorder %s31, %s34
      %p43 = scmp.eq.s32.totalorder %s26, 3
      %p44 = por %p42, %p43
      %p45 = scmp.ne.s32.totalorder %s34, %s35
      %p46 = scmp.eq.s32.totalorder %s26, 0
      %p47 = por %p45, %p46
      %p48 = scmp.ne.s32.totalorder %s34, %s35
      %p49 = scmp.eq.s32.totalorder %s27, 3
      %p50 = por %p48, %p49
      %p52 = scmp.ne.s32.totalorder %s35, %s51
      %p53 = scmp.eq.s32.totalorder %s27, 0
      %p54 = por %p52, %p53
      %s55 = ssub.s32 %s21, %s28
      %p56 = scmp.eq.s32.totalorder %s55, 0
      %s58 = sadd.s32 %s57, 1
      %s59 = scalar_select %p56, %s57, %s58
      %p62 = pneg %p56
      %p63 = scmp.eq.s32.totalorder %s21, 3
      %p64 = por %p62, %p63
      %p65 = scmp.ne.s32.totalorder %s57, %s60
      %p66 = scmp.eq.s32.totalorder %s21, 0
      %p67 = por %p65, %p66
      %p68 = scmp.ne.s32.totalorder %s57, %s60
      %p69 = scmp.eq.s32.totalorder %s26, 3
      %p70 = por %p68, %p69
      %p71 = scmp.ne.s32.totalorder %s60, %s61
      %p72 = scmp.eq.s32.totalorder %s26, 0
      %p73 = por %p71, %p72
      %p74 = scmp.ne.s32.totalorder %s60, %s61
      %p75 = scmp.eq.s32.totalorder %s27, 3
      %p76 = por %p74, %p75
      %p78 = scmp.ne.s32.totalorder %s61, %s77
      %p79 = scmp.eq.s32.totalorder %s27, 0
      %p80 = por %p78, %p79
      %s81 = ssub.s32 %s21, %s28
      %p82 = scmp.eq.s32.totalorder %s81, 0
      %s84 = sadd.s32 %s83, 1
      %s85 = scalar_select %p82, %s83, %s84
      %p88 = pneg %p82
      %p89 = scmp.eq.s32.totalorder %s21, 3
      %p90 = por %p88, %p89
      %p91 = scmp.ne.s32.totalorder %s83, %s86
      %p92 = scmp.eq.s32.totalorder %s21, 0
      %p93 = por %p91, %p92
      %p94 = scmp.ne.s32.totalorder %s83, %s86
      %p95 = scmp.eq.s32.totalorder %s26, 3
      %p96 = por %p94, %p95
      %p97 = scmp.ne.s32.totalorder %s86, %s87
      %p98 = scmp.eq.s32.totalorder %s26, 0
      %p99 = por %p97, %p98
      %p100 = scmp.ne.s32.totalorder %s86, %s87
      %p101 = scmp.eq.s32.totalorder %s27, 3
      %p102 = por %p100, %p101
      %p104 = scmp.ne.s32.totalorder %s87, %s103
      %p105 = scmp.eq.s32.totalorder %s27, 0
      %p106 = por %p104, %p105
      %s108 = sadd.s32 %s107, 1
      %p111 = scmp.eq.s32.totalorder %s21, 3
      %p112 = scmp.ne.s32.totalorder %s107, %s109
      %p113 = scmp.eq.s32.totalorder %s21, 0
      %p114 = por %p112, %p113
      %p115 = scmp.ne.s32.totalorder %s107, %s109
      %p116 = scmp.eq.s32.totalorder %s26, 3
      %p117 = por %p115, %p116
      %p118 = scmp.ne.s32.totalorder %s109, %s110
      %p119 = scmp.eq.s32.totalorder %s26, 0
      %p120 = por %p118, %p119
      %p121 = scmp.ne.s32.totalorder %s109, %s110
      %p122 = scmp.eq.s32.totalorder %s27, 3
      %p123 = por %p121, %p122
      %p125 = scmp.ne.s32.totalorder %s110, %s124
      %p126 = scmp.eq.s32.totalorder %s27, 0
      %p127 = por %p125, %p126
      %s129 = sadd.s32 %s128, 1
      %p132 = scmp.eq.s32.totalorder %s21, 3
      %p133 = scmp.ne.s32.totalorder %s128, %s130
      %p134 = scmp.eq.s32.totalorder %s21, 0
      %p135 = por %p133, %p134
      %p136 = scmp.ne.s32.totalorder %s128, %s130
      %p137 = scmp.eq.s32.totalorder %s26, 3
      %p138 = por %p136, %p137
      %p139 = scmp.ne.s32.totalorder %s130, %s131
      %p140 = scmp.eq.s32.totalorder %s26, 0
      %p141 = por %p139, %p140
      %p142 = scmp.ne.s32.totalorder %s130, %s131
      %p143 = scmp.eq.s32.totalorder %s27, 3
      %p144 = por %p142, %p143
      %p146 = scmp.ne.s32.totalorder %s131, %s145
      %p147 = scmp.eq.s32.totalorder %s27, 0
      %p148 = por %p146, %p147
      %s150 = sadd.s32 %s149, 1
      %p153 = scmp.eq.s32.totalorder %s21, 3
      %p154 = scmp.ne.s32.totalorder %s149, %s151
      %p155 = scmp.eq.s32.totalorder %s21, 0
      %p156 = por %p154, %p155
      %p157 = scmp.ne.s32.totalorder %s149, %s151
      %p158 = scmp.eq.s32.totalorder %s26, 3
      %p159 = por %p157, %p158
      %p160 = scmp.ne.s32.totalorder %s151, %s152
      %p161 = scmp.eq.s32.totalorder %s26, 0
      %p162 = por %p160, %p161
      %p163 = scmp.ne.s32.totalorder %s151, %s152
      %p164 = scmp.eq.s32.totalorder %s27, 3
      %p165 = por %p163, %p164
      %p167 = scmp.ne.s32.totalorder %s152, %s166
      %p168 = scmp.eq.s32.totalorder %s27, 0
      %p169 = por %p167, %p168
      %s171 = sadd.s32 %s170, 1
      %p174 = scmp.eq.s32.totalorder %s21, 3
      %p175 = scmp.ne.s32.totalorder %s170, %s172
      %p176 = scmp.eq.s32.totalorder %s21, 0
      %p177 = por %p175, %p176
      %p178 = scmp.ne.s32.totalorder %s170, %s172
      %p179 = scmp.eq.s32.totalorder %s26, 3
      %p180 = por %p178, %p179
      %p181 = scmp.ne.s32.totalorder %s172, %s173
      %p182 = scmp.eq.s32.totalorder %s26, 0
      %p183 = por %p181, %p182
      %p184 = scmp.ne.s32.totalorder %s172, %s173
      %p185 = scmp.eq.s32.totalorder %s27, 3
      %p186 = por %p184, %p185
      %p188 = scmp.ne.s32.totalorder %s173, %s187
      %p189 = scmp.eq.s32.totalorder %s27, 0
      %p190 = por %p188, %p189
      %s192 = sadd.s32 %s191, 1
      %p195 = scmp.eq.s32.totalorder %s21, 3
      %p196 = scmp.ne.s32.totalorder %s191, %s193
      %p197 = scmp.eq.s32.totalorder %s21, 0
      %p198 = por %p196, %p197
      %p199 = scmp.ne.s32.totalorder %s191, %s193
      %p200 = scmp.eq.s32.totalorder %s26, 3
      %p201 = por %p199, %p200
      %p202 = scmp.ne.s32.totalorder %s193, %s194
      %p203 = scmp.eq.s32.totalorder %s26, 0
      %p204 = por %p202, %p203
      %p205 = scmp.ne.s32.totalorder %s193, %s194
      %p206 = scmp.eq.s32.totalorder %s27, 3
      %p207 = por %p205, %p206
      %p209 = scmp.ne.s32.totalorder %s194, %s208
      %p210 = scmp.eq.s32.totalorder %s27, 0
      %p211 = por %p209, %p210
      %s213 = sadd.s32 %s212, 1
      %p216 = scmp.eq.s32.totalorder %s21, 3
      %p217 = scmp.ne.s32.totalorder %s212, %s214
      %p218 = scmp.eq.s32.totalorder %s21, 0
      %p219 = por %p217, %p218
      %p220 = scmp.ne.s32.totalorder %s212, %s214
      %p221 = scmp.eq.s32.totalorder %s26, 3
      %p222 = por %p220, %p221
      %p223 = scmp.ne.s32.totalorder %s214, %s215
      %p224 = scmp.eq.s32.totalorder %s26, 0
      %p225 = por %p223, %p224
      %p226 = scmp.ne.s32.totalorder %s214, %s215
      %p227 = scmp.eq.s32.totalorder %s27, 3
      %p228 = por %p226, %p227
      %p230 = scmp.ne.s32.totalorder %s215, %s229
      %p231 = scmp.eq.s32.totalorder %s27, 0
      %p232 = por %p230, %p231
      %s234 = sadd.s32 %s233, 1
      %p237 = scmp.eq.s32.totalorder %s21, 3
      %p238 = scmp.ne.s32.totalorder %s233, %s235
      %p239 = scmp.eq.s32.totalorder %s21, 0
      %p240 = por %p238, %p239
      %p241 = scmp.ne.s32.totalorder %s233, %s235
      %p242 = scmp.eq.s32.totalorder %s26, 3
      %p243 = por %p241, %p242
      %p244 = scmp.ne.s32.totalorder %s235, %s236
      %p245 = scmp.eq.s32.totalorder %s26, 0
      %p246 = por %p244, %p245
      %p247 = scmp.ne.s32.totalorder %s235, %s236
      %p248 = scmp.eq.s32.totalorder %s27, 3
      %p249 = por %p247, %p248
      %p251 = scmp.ne.s32.totalorder %s236, %s250
      %p252 = scmp.eq.s32.totalorder %s27, 0
      %p253 = por %p251, %p252
      %s255 = sadd.s32 %s254, 1
      %p258 = scmp.eq.s32.totalorder %s21, 3
      %p259 = scmp.ne.s32.totalorder %s254, %s256
      %p260 = scmp.eq.s32.totalorder %s21, 0
      %p261 = por %p259, %p260
      %p262 = scmp.ne.s32.totalorder %s254, %s256
      %p263 = scmp.eq.s32.totalorder %s26, 3
      %p264 = por %p262, %p263
      %p265 = scmp.ne.s32.totalorder %s256, %s257
      %p266 = scmp.eq.s32.totalorder %s26, 0
      %p267 = por %p265, %p266
      %p268 = scmp.ne.s32.totalorder %s256, %s257
      %p269 = scmp.eq.s32.totalorder %s27, 3
      %p270 = por %p268, %p269
      %p272 = scmp.ne.s32.totalorder %s257, %s271
      %p273 = scmp.eq.s32.totalorder %s27, 0
      %p274 = por %p272, %p273
      %s276 = sadd.s32 %s275, 1
      %p279 = scmp.eq.s32.totalorder %s21, 3
      %p280 = scmp.ne.s32.totalorder %s275, %s277
      %p281 = scmp.eq.s32.totalorder %s21, 0
      %p282 = por %p280, %p281
      %p283 = scmp.ne.s32.totalorder %s275, %s277
      %p284 = scmp.eq.s32.totalorder %s26, 3
      %p285 = por %p283, %p284
      %p286 = scmp.ne.s32.totalorder %s277, %s278
      %p287 = scmp.eq.s32.totalorder %s26, 0
      %p288 = por %p286, %p287
      %p289 = scmp.ne.s32.totalorder %s277, %s278
      %p290 = scmp.eq.s32.totalorder %s27, 3
      %p291 = por %p289, %p290
      %p293 = scmp.ne.s32.totalorder %s278, %s292
      %p294 = scmp.eq.s32.totalorder %s27, 0
      %p295 = por %p293, %p294
      %s297 = sadd.s32 %s296, 1
      %p300 = scmp.eq.s32.totalorder %s21, 3
      %p301 = scmp.ne.s32.totalorder %s296, %s298
      %p302 = scmp.eq.s32.totalorder %s21, 0
      %p303 = por %p301, %p302
      %p304 = scmp.ne.s32.totalorder %s296, %s298
      %p305 = scmp.eq.s32.totalorder %s26, 3
      %p306 = por %p304, %p305
      %p307 = scmp.ne.s32.totalorder %s298, %s299
      %p308 = scmp.eq.s32.totalorder %s26, 0
      %p309 = por %p307, %p308
      %p310 = scmp.ne.s32.totalorder %s298, %s299
      %p311 = scmp.eq.s32.totalorder %s27, 3
      %p312 = por %p310, %p311
      %p314 = scmp.ne.s32.totalorder %s299, %s313
      %p315 = scmp.eq.s32.totalorder %s27, 0
      %p316 = por %p314, %p315
      %s318 = sadd.s32 %s317, 1
      %p321 = scmp.eq.s32.totalorder %s21, 3
      %p322 = scmp.ne.s32.totalorder %s317, %s319
      %p323 = scmp.eq.s32.totalorder %s21, 0
      %p324 = por %p322, %p323
      %p325 = scmp.ne.s32.totalorder %s317, %s319
      %p326 = scmp.eq.s32.totalorder %s26, 3
      %p327 = por %p325, %p326
      %p328 = scmp.ne.s32.totalorder %s319, %s320
      %p329 = scmp.eq.s32.totalorder %s26, 0
      %p330 = por %p328, %p329
      %p331 = scmp.ne.s32.totalorder %s319, %s320
      %p332 = scmp.eq.s32.totalorder %s27, 3
      %p333 = por %p331, %p332
      %p335 = scmp.ne.s32.totalorder %s320, %s334
      %p336 = scmp.eq.s32.totalorder %s27, 0
      %p337 = por %p335, %p336
      %s338 = ssub.s32 %s21, %s28
      %p339 = scmp.eq.s32.totalorder %s338, 0
      %s341 = sadd.s32 %s340, 1
      %s342 = scalar_select %p339, %s340, %s341
      %p345 = pneg %p339
      %p346 = scmp.eq.s32.totalorder %s21, 3
      %p347 = por %p345, %p346
      %p348 = scmp.ne.s32.totalorder %s340, %s343
      %p349 = scmp.eq.s32.totalorder %s21, 0
      %p350 = por %p348, %p349
      %p351 = scmp.ne.s32.totalorder %s340, %s343
      %p352 = scmp.eq.s32.totalorder %s26, 3
      %p353 = por %p351, %p352
      %p354 = scmp.ne.s32.totalorder %s343, %s344
      %p355 = scmp.eq.s32.totalorder %s26, 0
      %p356 = por %p354, %p355
      %p357 = scmp.ne.s32.totalorder %s343, %s344
      %p358 = scmp.eq.s32.totalorder %s27, 3
      %p359 = por %p357, %p358
      %p361 = scmp.ne.s32.totalorder %s344, %s360
      %p362 = scmp.eq.s32.totalorder %s27, 0
      %p363 = por %p361, %p362
      %p364 = scmp.le.s32.totalorder 1, %s21
      %p365 = scmp.lt.s32.totalorder %s21, 5
      %p366 = pnand %p364, %p365
      %p367 = pneg %p366
      // Predicated region
      $region9: #{dnn_feature_dot.1} parent=5 // pred_check
        _
      $region10: #{dnn_feature_dot.1} parent=5 // pred_check_branch
        %369 = sbr.rel (%p366) target = $region12
      $region11: #{dnn_feature_dot.1} parent=5 // pred_region
        %s370 = ssub.s32 %s21, 1
        // Predicated region
        $region13: #{dnn_feature_dot.1} parent=11 // pred_check
          %p371 = pneg %p120
        $region14: #{dnn_feature_dot.1} parent=11 // pred_check_branch
          %373 = sbr.rel (%p371) target = $region16
        $region15: #{dnn_feature_dot.1} parent=11 // pred_region
          _
        $region16: #{dnn_feature_dot.1} parent=11 // pred_fallthru
          _
        // Predicated region
        $region17: #{dnn_feature_dot.1} parent=11 // pred_check
          %p374 = pneg %p141
        $region18: #{dnn_feature_dot.1} parent=11 // pred_check_branch
          %376 = sbr.rel (%p374) target = $region20
        $region19: #{dnn_feature_dot.1} parent=11 // pred_region
          _
        $region20: #{dnn_feature_dot.1} parent=11 // pred_fallthru
          _
        // Predicated region
        $region21: #{dnn_feature_dot.1} parent=11 // pred_check
          %p377 = pneg %p162
        $region22: #{dnn_feature_dot.1} parent=11 // pred_check_branch
          %379 = sbr.rel (%p377) target = $region24
        $region23: #{dnn_feature_dot.1} parent=11 // pred_region
          _
        $region24: #{dnn_feature_dot.1} parent=11 // pred_fallthru
          _
        // Predicated region
        $region25: #{dnn_feature_dot.1} parent=11 // pred_check
          %p380 = pneg %p183
        $region26: #{dnn_feature_dot.1} parent=11 // pred_check_branch
          %382 = sbr.rel (%p380) target = $region28
        $region27: #{dnn_feature_dot.1} parent=11 // pred_region
          _
        $region28: #{dnn_feature_dot.1} parent=11 // pred_fallthru
          _
        // Predicated region
        $region29: #{dnn_feature_dot.1} parent=11 // pred_check
          %p383 = pneg %p204
        $region30: #{dnn_feature_dot.1} parent=11 // pred_check_branch
          %385 = sbr.rel (%p383) target = $region32
        $region31: #{dnn_feature_dot.1} parent=11 // pred_region
          _
        $region32: #{dnn_feature_dot.1} parent=11 // pred_fallthru
          _
        // Predicated region
        $region33: #{dnn_feature_dot.1} parent=11 // pred_check
          %p386 = pneg %p225
        $region34: #{dnn_feature_dot.1} parent=11 // pred_check_branch
          %388 = sbr.rel (%p386) target = $region36
        $region35: #{dnn_feature_dot.1} parent=11 // pred_region
          _
        $region36: #{dnn_feature_dot.1} parent=11 // pred_fallthru
          _
        // Predicated region
        $region37: #{dnn_feature_dot.1} parent=11 // pred_check
          %p389 = pneg %p246
        $region38: #{dnn_feature_dot.1} parent=11 // pred_check_branch
          %391 = sbr.rel (%p389) target = $region40
        $region39: #{dnn_feature_dot.1} parent=11 // pred_region
          _
        $region40: #{dnn_feature_dot.1} parent=11 // pred_fallthru
          _
        // Predicated region
        $region41: #{dnn_feature_dot.1} parent=11 // pred_check
          %p392 = pneg %p267
        $region42: #{dnn_feature_dot.1} parent=11 // pred_check_branch
          %394 = sbr.rel (%p392) target = $region44
        $region43: #{dnn_feature_dot.1} parent=11 // pred_region
          _
        $region44: #{dnn_feature_dot.1} parent=11 // pred_fallthru
          _
        // Predicated region
        $region45: #{dnn_feature_dot.1} parent=11 // pred_check
          %p395 = pneg %p288
        $region46: #{dnn_feature_dot.1} parent=11 // pred_check_branch
          %397 = sbr.rel (%p395) target = $region48
        $region47: #{dnn_feature_dot.1} parent=11 // pred_region
          _
        $region48: #{dnn_feature_dot.1} parent=11 // pred_fallthru
          _
        // Predicated region
        $region49: #{dnn_feature_dot.1} parent=11 // pred_check
          %p398 = pneg %p309
        $region50: #{dnn_feature_dot.1} parent=11 // pred_check_branch
          %400 = sbr.rel (%p398) target = $region52
        $region51: #{dnn_feature_dot.1} parent=11 // pred_region
          _
        $region52: #{dnn_feature_dot.1} parent=11 // pred_fallthru
          _
        // Predicated region
        $region53: #{dnn_feature_dot.1} parent=11 // pred_check
          %p401 = pneg %p330
        $region54: #{dnn_feature_dot.1} parent=11 // pred_check_branch
          %403 = sbr.rel (%p401) target = $region56
        $region55: #{dnn_feature_dot.1} parent=11 // pred_region
          %s405 = ssub.s32 16, 16
          %406 = vsyncadd [#allocation3], %s405
          %s408 = sshll.u32 %s13, 4
          %s409 = int_to_ptr.vmem [resolvable:$true] %s408
          %411 = dma.vmem_to_smem %s409, 16, [#allocation2], [#allocation3]
        $region56: #{dnn_feature_dot.1} parent=11 // pred_fallthru
          _
      $region12: #{dnn_feature_dot.1} parent=5 // pred_fallthru
        _
      %p412 = scmp.lt.s32.totalorder %s21, 4
      // Predicated region
      $region57: #{dnn_feature_dot.1} parent=5 // pred_check
        %p413 = pneg %p412
      $region58: #{dnn_feature_dot.1} parent=5 // pred_check_branch
        %415 = sbr.rel (%p413) target = $region60
      $region59: #{dnn_feature_dot.1} parent=5 // pred_region
        // Predicated region
        $region61: #{dnn_feature_dot.1} parent=59 // pred_check
          %p416 = pneg %p41
        $region62: #{dnn_feature_dot.1} parent=59 // pred_check_branch
          %418 = sbr.rel (%p416) target = $region64
        $region63: #{dnn_feature_dot.1} parent=59 // pred_region
          %p419 = scmp.lt.s32.totalorder %s21, 3
          %s420 = scalar_select %p419, %s21, 3
          %s421 = smul.addr %s420, 4
          %s422 = scalar_lea.vmem %s0, %s421
        $region64: #{dnn_feature_dot.1} parent=59 // pred_fallthru
          _
        // Predicated region
        $region65: #{dnn_feature_dot.1} parent=59 // pred_check
          %p423 = pneg %p67
        $region66: #{dnn_feature_dot.1} parent=59 // pred_check_branch
          %425 = sbr.rel (%p423) target = $region68
        $region67: #{dnn_feature_dot.1} parent=59 // pred_region
          %p426 = scmp.lt.s32.totalorder %s21, 3
          %s427 = scalar_select %p426, %s21, 3
          %s428 = smul.addr %s427, 3
          %s429 = smul.addr %s428, 4
          %s430 = scalar_lea.vmem %s1, %s429
        $region68: #{dnn_feature_dot.1} parent=59 // pred_fallthru
          _
        // Predicated region
        $region69: #{dnn_feature_dot.1} parent=59 // pred_check
          %p431 = pneg %p93
        $region70: #{dnn_feature_dot.1} parent=59 // pred_check_branch
          %433 = sbr.rel (%p431) target = $region72
        $region71: #{dnn_feature_dot.1} parent=59 // pred_region
          %p434 = scmp.lt.s32.totalorder %s21, 3
          %s435 = scalar_select %p434, %s21, 3
          %s436 = smul.addr %s435, 2
          %s437 = smul.addr %s436, 4
          %s438 = scalar_lea.vmem %s2, %s437
        $region72: #{dnn_feature_dot.1} parent=59 // pred_fallthru
          _
      $region60: #{dnn_feature_dot.1} parent=5 // pred_fallthru
        _
      %p439 = scmp.le.s32.totalorder 1, %s21
      %p440 = scmp.lt.s32.totalorder %s21, 5
      %p441 = pnand %p439, %p440
      %p442 = pneg %p441
      // Predicated region
      $region73: #{dnn_feature_dot.1} parent=5 // pred_check
        _
      $region74: #{dnn_feature_dot.1} parent=5 // pred_check_branch
        %444 = sbr.rel (%p441) target = $region76
      $region75: #{dnn_feature_dot.1} parent=5 // pred_region
        %s445 = ssub.s32 %s21, 1
        // Predicated region
        $region77: #{dnn_feature_dot.1} parent=75 // pred_check
          %p446 = pneg %p330
        $region78: #{dnn_feature_dot.1} parent=75 // pred_check_branch
          %448 = sbr.rel (%p446) target = $region80
        $region79: #{dnn_feature_dot.1} parent=75 // pred_region
          %449 = dma.done [#allocation3], 16
        $region80: #{dnn_feature_dot.1} parent=75 // pred_fallthru
          _
        %450 = sfence
        %p451 = scmp.lt.s32.totalorder %s26, 3
        %s452 = scalar_select %p451, %s26, 3
        %s453 = smul.addr %s452, 4
        %s454 = scalar_lea.vmem %s0, %s453
        %p455 = pneg %p47
        %p456 = pneg %p44
        %p457 = scmp.lt.s32.totalorder %s26, 3
        %s458 = scalar_select %p457, %s26, 3
        %s459 = smul.addr %s458, 3
        %s460 = smul.addr %s459, 4
        %s461 = scalar_lea.vmem %s1, %s460
        %p462 = pneg %p73
        %p463 = pneg %p70
        %p464 = scmp.lt.s32.totalorder %s26, 3
        %s465 = scalar_select %p464, %s26, 3
        %s466 = smul.addr %s465, 2
        %s467 = smul.addr %s466, 4
        %s468 = scalar_lea.vmem %s2, %s467
        %p469 = pneg %p99
        %p470 = pneg %p96
        %p471 = pneg %p120
        %p472 = pneg %p117
        %p473 = pneg %p141
        %p474 = pneg %p138
        %p475 = pneg %p162
        %p476 = pneg %p159
        %p477 = pneg %p183
        %p478 = pneg %p180
        %p479 = pneg %p204
        %p480 = pneg %p201
        %p481 = pneg %p225
        %p482 = pneg %p222
        %p483 = pneg %p246
        %p484 = pneg %p243
        %p485 = pneg %p267
        %p486 = pneg %p264
        %p487 = pneg %p288
        %p488 = pneg %p285
        %p489 = pneg %p309
        %p490 = pneg %p306
        %p491 = pneg %p330
        %p492 = pneg %p327
        %p493 = pneg %p356
        %p494 = pneg %p353
        %p495 = scmp.lt.s32.totalorder %s26, 3
        %s496 = scalar_select %p495, %s26, 3
        %s497 = smul.addr %s496, 8
        %s498 = scalar_lea.vmem %s14, %s497
        %p499 = scmp.lt.s32.totalorder %s26, 3
        %s500 = scalar_select %p499, %s26, 3
        %s501 = smul.addr %s500, 4
        %s502 = scalar_lea.vmem %s0, %s501
        %p503 = scmp.lt.s32.totalorder %s26, 3
        %s504 = scalar_select %p503, %s26, 3
        %s505 = smul.addr %s504, 3
        %s506 = smul.addr %s505, 4
        %s507 = scalar_lea.vmem %s1, %s506
        %p508 = scmp.lt.s32.totalorder %s26, 3
        %s509 = scalar_select %p508, %s26, 3
        %s510 = smul.addr %s509, 2
        %s511 = smul.addr %s510, 4
        %s512 = scalar_lea.vmem %s2, %s511
        %p513 = scmp.lt.s32.totalorder %s26, 3
        %s514 = scalar_select %p513, %s26, 3
        %s515 = smul.addr %s514, 8
        %s516 = scalar_lea.vmem %s14, %s515
        %v518 = vld [vmem:[%s502] sm:$0xf]
        %v519 = vld [vmem:[%s3] sm:$0xff]
        %v520 = vld [vmem:[%s3 + $0x8] sm:$0xff]
        %v521 = vld [vmem:[%s3 + $0x10] sm:$0xff]
        %v522 = vld [vmem:[%s3 + $0x18] sm:$0xff]
        %v523 = vld [vmem:[%s3 + $0x20] sm:$0xff]
        %v524 = vld [vmem:[%s3 + $0x28] sm:$0xff]
        %v525 = vld [vmem:[%s3 + $0x30] sm:$0xff]
        %v526 = vld [vmem:[%s3 + $0x38] sm:$0xff]
        %v527 = vld [vmem:[%s3 + $0x40] sm:$0xff]
        %v528 = vld [vmem:[%s3 + $0x48] sm:$0xff]
        %v529 = vld [vmem:[%s3 + $0x50] sm:$0xff]
        %v530 = vld [vmem:[%s3 + $0x58] sm:$0xff]
        %v531 = vld [vmem:[%s3 + $0x60] sm:$0xff]
        %v532 = vld [vmem:[%s3 + $0x68] sm:$0xff]
        %v533 = vld [vmem:[%s3 + $0x70] sm:$0xff]
        %v534 = vld [vmem:[%s3 + $0x78] sm:$0xff]
        %v535 = vld [vmem:[%s3 + $0x80] sm:$0xff]
        %v536 = vld [vmem:[%s3 + $0x88] sm:$0xff]
        %v537 = vld [vmem:[%s3 + $0x90] sm:$0xff]
        %v538 = vld [vmem:[%s3 + $0x98] sm:$0xff]
        %v539 = vld [vmem:[%s3 + $0xa0] sm:$0xff]
        %v540 = vld [vmem:[%s3 + $0xa8] sm:$0xff]
        %v541 = vld [vmem:[%s3 + $0xb0] sm:$0xff]
        %v542 = vld [vmem:[%s3 + $0xb8] sm:$0xff]
        %v543 = vld [vmem:[%s3 + $0xc0] sm:$0xff]
        %v544 = vld [vmem:[%s3 + $0xc8] sm:$0xff]
        %v545 = vld [vmem:[%s3 + $0xd0] sm:$0xff]
        %v546 = vld [vmem:[%s3 + $0xd8] sm:$0xff]
        %v547 = vld [vmem:[%s3 + $0xe0] sm:$0xff]
        %v548 = vld [vmem:[%s3 + $0xe8] sm:$0xff]
        %v549 = vld [vmem:[%s3 + $0xf0] sm:$0xff]
        %v550 = vld [vmem:[%s3 + $0xf8] sm:$0xff]
        %v551 = vld [vmem:[%s4] sm:$0xf]
        %v553 = vlaneseq
        %v554 = vshrl.u32 %v553, 7
        %v555 = vsub.s32 0, %v554
        %v556 = vrot.slane %v551, %v555
        %v557 = vlaneseq
        %v558 = vshrl.u32 %v557, 7
        %v559 = vsub.s32 1, %v558
        %v560 = vrot.slane %v551, %v559
        %v561 = vlaneseq
        %v562 = vshrl.u32 %v561, 7
        %v563 = vsub.s32 2, %v562
        %v564 = vrot.slane %v551, %v563
        %v565 = vlaneseq
        %v566 = vshrl.u32 %v565, 7
        %v567 = vsub.s32 3, %v566
        %v568 = vrot.slane %v551, %v567
        %v605 = vunpack.c.l.b16 %v519
        %v606 = vunpack.c.h.b16 %v519
        %v607 = vunpack.c.l.b16 %v520
        %v608 = vunpack.c.h.b16 %v520
        %v609 = vunpack.c.l.b16 %v521
        %v610 = vunpack.c.h.b16 %v521
        %v611 = vunpack.c.l.b16 %v522
        %v612 = vunpack.c.h.b16 %v522
        %v613 = vunpack.c.l.b16 %v523
        %v614 = vunpack.c.h.b16 %v523
        %v615 = vunpack.c.l.b16 %v524
        %v616 = vunpack.c.h.b16 %v524
        %v617 = vunpack.c.l.b16 %v525
        %v618 = vunpack.c.h.b16 %v525
        %v619 = vunpack.c.l.b16 %v526
        %v620 = vunpack.c.h.b16 %v526
        %v621 = vunpack.c.l.b16 %v527
        %v622 = vunpack.c.h.b16 %v527
        %v623 = vunpack.c.l.b16 %v528
        %v624 = vunpack.c.h.b16 %v528
        %v625 = vunpack.c.l.b16 %v529
        %v626 = vunpack.c.h.b16 %v529
        %v627 = vunpack.c.l.b16 %v530
        %v628 = vunpack.c.h.b16 %v530
        %v629 = vunpack.c.l.b16 %v531
        %v630 = vunpack.c.h.b16 %v531
        %v631 = vunpack.c.l.b16 %v532
        %v632 = vunpack.c.h.b16 %v532
        %v633 = vunpack.c.l.b16 %v533
        %v634 = vunpack.c.h.b16 %v533
        %v635 = vunpack.c.l.b16 %v534
        %v636 = vunpack.c.h.b16 %v534
        %v637 = vunpack.c.l.b16 %v535
        %v638 = vunpack.c.h.b16 %v535
        %v639 = vunpack.c.l.b16 %v536
        %v640 = vunpack.c.h.b16 %v536
        %v641 = vunpack.c.l.b16 %v537
        %v642 = vunpack.c.h.b16 %v537
        %v643 = vunpack.c.l.b16 %v538
        %v644 = vunpack.c.h.b16 %v538
        %v645 = vunpack.c.l.b16 %v539
        %v646 = vunpack.c.h.b16 %v539
        %v647 = vunpack.c.l.b16 %v540
        %v648 = vunpack.c.h.b16 %v540
        %v649 = vunpack.c.l.b16 %v541
        %v650 = vunpack.c.h.b16 %v541
        %v651 = vunpack.c.l.b16 %v542
        %v652 = vunpack.c.h.b16 %v542
        %v653 = vunpack.c.l.b16 %v543
        %v654 = vunpack.c.h.b16 %v543
        %v655 = vunpack.c.l.b16 %v544
        %v656 = vunpack.c.h.b16 %v544
        %v657 = vunpack.c.l.b16 %v545
        %v658 = vunpack.c.h.b16 %v545
        %v659 = vunpack.c.l.b16 %v546
        %v660 = vunpack.c.h.b16 %v546
        %v661 = vunpack.c.l.b16 %v547
        %v662 = vunpack.c.h.b16 %v547
        %v663 = vunpack.c.l.b16 %v548
        %v664 = vunpack.c.h.b16 %v548
        %v665 = vunpack.c.l.b16 %v549
        %v666 = vunpack.c.h.b16 %v549
        %v667 = vunpack.c.l.b16 %v550
        %v668 = vunpack.c.h.b16 %v550
        %v669 = vpack.c.b16 %v609, %v605
        %v670 = vpack.c.b16 %v610, %v606
        %v671 = vpack.c.b16 %v611, %v607
        %v672 = vpack.c.b16 %v612, %v608
        %v673 = vpack.c.b16 %v617, %v613
        %v674 = vpack.c.b16 %v618, %v614
        %v675 = vpack.c.b16 %v619, %v615
        %v676 = vpack.c.b16 %v620, %v616
        %v677 = vpack.c.b16 %v625, %v621
        %v678 = vpack.c.b16 %v626, %v622
        %v679 = vpack.c.b16 %v627, %v623
        %v680 = vpack.c.b16 %v628, %v624
        %v681 = vpack.c.b16 %v633, %v629
        %v682 = vpack.c.b16 %v634, %v630
        %v683 = vpack.c.b16 %v635, %v631
        %v684 = vpack.c.b16 %v636, %v632
        %v685 = vpack.c.b16 %v641, %v637
        %v686 = vpack.c.b16 %v642, %v638
        %v687 = vpack.c.b16 %v643, %v639
        %v688 = vpack.c.b16 %v644, %v640
        %v689 = vpack.c.b16 %v649, %v645
        %v690 = vpack.c.b16 %v650, %v646
        %v691 = vpack.c.b16 %v651, %v647
        %v692 = vpack.c.b16 %v652, %v648
        %v693 = vpack.c.b16 %v657, %v653
        %v694 = vpack.c.b16 %v658, %v654
        %v695 = vpack.c.b16 %v659, %v655
        %v696 = vpack.c.b16 %v660, %v656
        %v697 = vpack.c.b16 %v665, %v661
        %v698 = vpack.c.b16 %v666, %v662
        %v699 = vpack.c.b16 %v667, %v663
        %v700 = vpack.c.b16 %v668, %v664
        %733 = vmatprep.subr.bf16.mxu0 %v698
        %734 = vmatpush1.bf16.msra.mxu0 %v697
        %735 = vmatprep.subr.bf16.mxu0 %v694
        %736 = vmatpush1.bf16.msra.mxu0 %v693
        %737 = vmatprep.subr.bf16.mxu0 %v690
        %738 = vmatpush1.bf16.msra.mxu0 %v689
        %739 = vmatprep.subr.bf16.mxu0 %v686
        %740 = vmatpush1.bf16.msra.mxu0 %v685
        %741 = vmatprep.subr.bf16.mxu0 %v682
        %742 = vmatpush1.bf16.msra.mxu0 %v681
        %743 = vmatprep.subr.bf16.mxu0 %v678
        %744 = vmatpush1.bf16.msra.mxu0 %v677
        %745 = vmatprep.subr.bf16.mxu0 %v674
        %746 = vmatpush1.bf16.msra.mxu0 %v673
        %747 = vmatprep.subr.bf16.mxu0 %v670
        %748 = vmatpush1.bf16.msra.mxu0 %v669
        %749 = vmatprep.subr.bf16.mxu0 0
        %750 = vmatpush2.bf16.msra.mxu0 0
        %751 = vmatprep.subr.bf16.mxu0 0
        %752 = vmatpush2.bf16.msra.mxu0 0
        %753 = vmatprep.subr.bf16.mxu0 0
        %754 = vmatpush2.bf16.msra.mxu0 0
        %755 = vmatprep.subr.bf16.mxu0 0
        %756 = vmatpush2.bf16.msra.mxu0 0
        %757 = vmatprep.subr.bf16.mxu0 0
        %758 = vmatpush2.bf16.msra.mxu0 0
        %759 = vmatprep.subr.bf16.mxu0 0
        %760 = vmatpush2.bf16.msra.mxu0 0
        %761 = vmatprep.subr.bf16.mxu0 0
        %762 = vmatpush2.bf16.msra.mxu0 0
        %763 = vmatprep.subr.bf16.mxu0 0
        %764 = vmatpush2.bf16.msra.mxu0 0
        %765 = vmatprep.mubr.bf16.mxu0 0
        %766 = vmatmul.mubr.bf16.gmra.mxu0 %v518
        %v767 = vpop.f32.mrf.mxu0
        %v768 = vadd.f32 %v556, %v767
        %v769 = vpop.f32.mrf.mxu0
        %v770 = vadd.f32 %v560, %v769
        %v771 = vpop.f32.mrf.mxu0
        %v772 = vpop.f32.mrf.mxu0
        %773 = vdwg.mxu0
        %774 = vmatprep.subr.bf16.mxu0 %v700
        %775 = vmatpush1.bf16.msra.mxu0 %v699
        %776 = vmatprep.subr.bf16.mxu0 %v696
        %777 = vmatpush1.bf16.msra.mxu0 %v695
        %778 = vmatprep.subr.bf16.mxu0 %v692
        %779 = vmatpush1.bf16.msra.mxu0 %v691
        %780 = vmatprep.subr.bf16.mxu0 %v688
        %781 = vmatpush1.bf16.msra.mxu0 %v687
        %782 = vmatprep.subr.bf16.mxu0 %v684
        %783 = vmatpush1.bf16.msra.mxu0 %v683
        %784 = vmatprep.subr.bf16.mxu0 %v680
        %785 = vmatpush1.bf16.msra.mxu0 %v679
        %786 = vmatprep.subr.bf16.mxu0 %v676
        %787 = vmatpush1.bf16.msra.mxu0 %v675
        %788 = vmatprep.subr.bf16.mxu0 %v672
        %789 = vmatpush1.bf16.msra.mxu0 %v671
        %790 = vmatprep.subr.bf16.mxu0 0
        %791 = vmatpush2.bf16.msra.mxu0 0
        %792 = vmatprep.subr.bf16.mxu0 0
        %793 = vmatpush2.bf16.msra.mxu0 0
        %794 = vmatprep.subr.bf16.mxu0 0
        %795 = vmatpush2.bf16.msra.mxu0 0
        %796 = vmatprep.subr.bf16.mxu0 0
        %797 = vmatpush2.bf16.msra.mxu0 0
        %798 = vmatprep.subr.bf16.mxu0 0
        %799 = vmatpush2.bf16.msra.mxu0 0
        %800 = vmatprep.subr.bf16.mxu0 0
        %801 = vmatpush2.bf16.msra.mxu0 0
        %802 = vmatprep.subr.bf16.mxu0 0
        %803 = vmatpush2.bf16.msra.mxu0 0
        %804 = vmatprep.subr.bf16.mxu0 0
        %805 = vmatpush2.bf16.msra.mxu0 0
        %806 = vmatprep.mubr.bf16.mxu0 0
        %807 = vmatmul.mubr.bf16.gmra.mxu0 %v518
        %v808 = vpop.f32.mrf.mxu0
        %v809 = vadd.f32 %v564, %v808
        %v810 = vpop.f32.mrf.mxu0
        %v811 = vadd.f32 %v568, %v810
        %v812 = vpop.f32.mrf.mxu0
        %v813 = vpop.f32.mrf.mxu0
        %814 = vdwg.mxu0
        %v815 = vmax.f32 %v768, 0.0
        %v816 = vmax.f32 %v770, 0.0
        %v817 = vmax.f32 %v809, 0.0
        %v818 = vmax.f32 %v811, 0.0
        %v819 = vpack.c.bf16 %v815, %v815
        %v820 = vpack.c.bf16 %v816, %v816
        %v821 = vpack.c.bf16 %v817, %v817
        %v822 = vpack.c.bf16 %v818, %v818
        %v823 = vld [vmem:[%s9] sm:$0xf]
        %v824 = vld [vmem:[%s9 + $0x4] sm:$0xf]
        %v825 = vld [vmem:[%s9 + $0x8] sm:$0xf]
        %v826 = vld [vmem:[%s9 + $0xc] sm:$0xf]
        %v827 = vld [vmem:[%s9 + $0x10] sm:$0xf]
        %v828 = vld [vmem:[%s9 + $0x14] sm:$0xf]
        %v829 = vld [vmem:[%s9 + $0x18] sm:$0xf]
        %v830 = vld [vmem:[%s9 + $0x1c] sm:$0xf]
        %v831 = vld [vmem:[%s9 + $0x20] sm:$0xf]
        %v832 = vld [vmem:[%s9 + $0x24] sm:$0xf]
        %v833 = vld [vmem:[%s9 + $0x28] sm:$0xf]
        %v834 = vld [vmem:[%s9 + $0x2c] sm:$0xf]
        %v835 = vld [vmem:[%s9 + $0x30] sm:$0xf]
        %v836 = vld [vmem:[%s9 + $0x34] sm:$0xf]
        %v837 = vld [vmem:[%s9 + $0x38] sm:$0xf]
        %v838 = vld [vmem:[%s9 + $0x3c] sm:$0xf]
        %v839 = vld [vmem:[%s9 + $0x40] sm:$0xf]
        %v840 = vld [vmem:[%s9 + $0x44] sm:$0xf]
        %v841 = vld [vmem:[%s9 + $0x48] sm:$0xf]
        %v842 = vld [vmem:[%s9 + $0x4c] sm:$0xf]
        %v843 = vld [vmem:[%s9 + $0x50] sm:$0xf]
        %v844 = vld [vmem:[%s9 + $0x54] sm:$0xf]
        %v845 = vld [vmem:[%s9 + $0x58] sm:$0xf]
        %v846 = vld [vmem:[%s9 + $0x5c] sm:$0xf]
        %v847 = vld [vmem:[%s9 + $0x60] sm:$0xf]
        %v848 = vld [vmem:[%s9 + $0x64] sm:$0xf]
        %v849 = vld [vmem:[%s9 + $0x68] sm:$0xf]
        %v850 = vld [vmem:[%s9 + $0x6c] sm:$0xf]
        %v851 = vld [vmem:[%s9 + $0x70] sm:$0xf]
        %v852 = vld [vmem:[%s9 + $0x74] sm:$0xf]
        %v853 = vld [vmem:[%s9 + $0x78] sm:$0xf]
        %v854 = vld [vmem:[%s9 + $0x7c] sm:$0xf]
        %v855 = vld [vmem:[%s9 + $0x80] sm:$0xf]
        %v856 = vld [vmem:[%s9 + $0x84] sm:$0xf]
        %v857 = vld [vmem:[%s9 + $0x88] sm:$0xf]
        %v858 = vld [vmem:[%s9 + $0x8c] sm:$0xf]
        %v859 = vld [vmem:[%s9 + $0x90] sm:$0xf]
        %v860 = vld [vmem:[%s9 + $0x94] sm:$0xf]
        %v861 = vld [vmem:[%s9 + $0x98] sm:$0xf]
        %v862 = vld [vmem:[%s9 + $0x9c] sm:$0xf]
        %v863 = vld [vmem:[%s9 + $0xa0] sm:$0xf]
        %v864 = vld [vmem:[%s9 + $0xa4] sm:$0xf]
        %v865 = vld [vmem:[%s9 + $0xa8] sm:$0xf]
        %v866 = vld [vmem:[%s9 + $0xac] sm:$0xf]
        %v867 = vld [vmem:[%s9 + $0xb0] sm:$0xf]
        %v868 = vld [vmem:[%s9 + $0xb4] sm:$0xf]
        %v869 = vld [vmem:[%s9 + $0xb8] sm:$0xf]
        %v870 = vld [vmem:[%s9 + $0xbc] sm:$0xf]
        %v871 = vld [vmem:[%s9 + $0xc0] sm:$0xf]
        %v872 = vld [vmem:[%s9 + $0xc4] sm:$0xf]
        %v873 = vld [vmem:[%s9 + $0xc8] sm:$0xf]
        %v874 = vld [vmem:[%s9 + $0xcc] sm:$0xf]
        %v875 = vld [vmem:[%s9 + $0xd0] sm:$0xf]
        %v876 = vld [vmem:[%s9 + $0xd4] sm:$0xf]
        %v877 = vld [vmem:[%s9 + $0xd8] sm:$0xf]
        %v878 = vld [vmem:[%s9 + $0xdc] sm:$0xf]
        %v879 = vld [vmem:[%s9 + $0xe0] sm:$0xf]
        %v880 = vld [vmem:[%s9 + $0xe4] sm:$0xf]
        %v881 = vld [vmem:[%s9 + $0xe8] sm:$0xf]
        %v882 = vld [vmem:[%s9 + $0xec] sm:$0xf]
        %v883 = vld [vmem:[%s9 + $0xf0] sm:$0xf]
        %v884 = vld [vmem:[%s9 + $0xf4] sm:$0xf]
        %v885 = vld [vmem:[%s9 + $0xf8] sm:$0xf]
        %v886 = vld [vmem:[%s9 + $0xfc] sm:$0xf]
        %v887 = vld [vmem:[%s10] sm:$0x1]
        %v889 = vlaneseq
        %v890 = vshrl.u32 %v889, 7
        %v891 = vsub.s32 0, %v890
        %v892 = vrot.slane %v887, %v891
        %v958 = vunpack.c.l.b16 %v823
        %v959 = vunpack.c.l.b16 %v824
        %v960 = vunpack.c.l.b16 %v825
        %v961 = vunpack.c.l.b16 %v826
        %v962 = vunpack.c.l.b16 %v827
        %v963 = vunpack.c.l.b16 %v828
        %v964 = vunpack.c.l.b16 %v829
        %v965 = vunpack.c.l.b16 %v830
        %v966 = vunpack.c.l.b16 %v831
        %v967 = vunpack.c.l.b16 %v832
        %v968 = vunpack.c.l.b16 %v833
        %v969 = vunpack.c.l.b16 %v834
        %v970 = vunpack.c.l.b16 %v835
        %v971 = vunpack.c.l.b16 %v836
        %v972 = vunpack.c.l.b16 %v837
        %v973 = vunpack.c.l.b16 %v838
        %v974 = vunpack.c.l.b16 %v839
        %v975 = vunpack.c.l.b16 %v840
        %v976 = vunpack.c.l.b16 %v841
        %v977 = vunpack.c.l.b16 %v842
        %v978 = vunpack.c.l.b16 %v843
        %v979 = vunpack.c.l.b16 %v844
        %v980 = vunpack.c.l.b16 %v845
        %v981 = vunpack.c.l.b16 %v846
        %v982 = vunpack.c.l.b16 %v847
        %v983 = vunpack.c.l.b16 %v848
        %v984 = vunpack.c.l.b16 %v849
        %v985 = vunpack.c.l.b16 %v850
        %v986 = vunpack.c.l.b16 %v851
        %v987 = vunpack.c.l.b16 %v852
        %v988 = vunpack.c.l.b16 %v853
        %v989 = vunpack.c.l.b16 %v854
        %v990 = vunpack.c.l.b16 %v855
        %v991 = vunpack.c.l.b16 %v856
        %v992 = vunpack.c.l.b16 %v857
        %v993 = vunpack.c.l.b16 %v858
        %v994 = vunpack.c.l.b16 %v859
        %v995 = vunpack.c.l.b16 %v860
        %v996 = vunpack.c.l.b16 %v861
        %v997 = vunpack.c.l.b16 %v862
        %v998 = vunpack.c.l.b16 %v863
        %v999 = vunpack.c.l.b16 %v864
        %v1000 = vunpack.c.l.b16 %v865
        %v1001 = vunpack.c.l.b16 %v866
        %v1002 = vunpack.c.l.b16 %v867
        %v1003 = vunpack.c.l.b16 %v868
        %v1004 = vunpack.c.l.b16 %v869
        %v1005 = vunpack.c.l.b16 %v870
        %v1006 = vunpack.c.l.b16 %v871
        %v1007 = vunpack.c.l.b16 %v872
        %v1008 = vunpack.c.l.b16 %v873
        %v1009 = vunpack.c.l.b16 %v874
        %v1010 = vunpack.c.l.b16 %v875
        %v1011 = vunpack.c.l.b16 %v876
        %v1012 = vunpack.c.l.b16 %v877
        %v1013 = vunpack.c.l.b16 %v878
        %v1014 = vunpack.c.l.b16 %v879
        %v1015 = vunpack.c.l.b16 %v880
        %v1016 = vunpack.c.l.b16 %v881
        %v1017 = vunpack.c.l.b16 %v882
        %v1018 = vunpack.c.l.b16 %v883
        %v1019 = vunpack.c.l.b16 %v884
        %v1020 = vunpack.c.l.b16 %v885
        %v1021 = vunpack.c.l.b16 %v886
        %v1022 = vpack.c.b16 %v959, %v958
        %v1023 = vpack.c.b16 %v961, %v960
        %v1024 = vpack.c.b16 %v963, %v962
        %v1025 = vpack.c.b16 %v965, %v964
        %v1026 = vpack.c.b16 %v967, %v966
        %v1027 = vpack.c.b16 %v969, %v968
        %v1028 = vpack.c.b16 %v971, %v970
        %v1029 = vpack.c.b16 %v973, %v972
        %v1030 = vpack.c.b16 %v975, %v974
        %v1031 = vpack.c.b16 %v977, %v976
        %v1032 = vpack.c.b16 %v979, %v978
        %v1033 = vpack.c.b16 %v981, %v980
        %v1034 = vpack.c.b16 %v983, %v982
        %v1035 = vpack.c.b16 %v985, %v984
        %v1036 = vpack.c.b16 %v987, %v986
        %v1037 = vpack.c.b16 %v989, %v988
        %v1038 = vpack.c.b16 %v991, %v990
        %v1039 = vpack.c.b16 %v993, %v992
        %v1040 = vpack.c.b16 %v995, %v994
        %v1041 = vpack.c.b16 %v997, %v996
        %v1042 = vpack.c.b16 %v999, %v998
        %v1043 = vpack.c.b16 %v1001, %v1000
        %v1044 = vpack.c.b16 %v1003, %v1002
        %v1045 = vpack.c.b16 %v1005, %v1004
        %v1046 = vpack.c.b16 %v1007, %v1006
        %v1047 = vpack.c.b16 %v1009, %v1008
        %v1048 = vpack.c.b16 %v1011, %v1010
        %v1049 = vpack.c.b16 %v1013, %v1012
        %v1050 = vpack.c.b16 %v1015, %v1014
        %v1051 = vpack.c.b16 %v1017, %v1016
        %v1052 = vpack.c.b16 %v1019, %v1018
        %v1053 = vpack.c.b16 %v1021, %v1020
        %1086 = vmatprep.subr.bf16.mxu0 0
        %1087 = vmatpush1.bf16.msra.mxu0 %v1029
        %1088 = vmatprep.subr.bf16.mxu0 0
        %1089 = vmatpush1.bf16.msra.mxu0 %v1028
        %1090 = vmatprep.subr.bf16.mxu0 0
        %1091 = vmatpush1.bf16.msra.mxu0 %v1027
        %1092 = vmatprep.subr.bf16.mxu0 0
        %1093 = vmatpush1.bf16.msra.mxu0 %v1026
        %1094 = vmatprep.subr.bf16.mxu0 0
        %1095 = vmatpush1.bf16.msra.mxu0 %v1025
        %1096 = vmatprep.subr.bf16.mxu0 0
        %1097 = vmatpush1.bf16.msra.mxu0 %v1024
        %1098 = vmatprep.subr.bf16.mxu0 0
        %1099 = vmatpush1.bf16.msra.mxu0 %v1023
        %1100 = vmatprep.subr.bf16.mxu0 0
        %1101 = vmatpush1.bf16.msra.mxu0 %v1022
        %1102 = vmatprep.subr.bf16.mxu0 0
        %1103 = vmatpush2.bf16.msra.mxu0 %v1037
        %1104 = vmatprep.subr.bf16.mxu0 0
        %1105 = vmatpush2.bf16.msra.mxu0 %v1036
        %1106 = vmatprep.subr.bf16.mxu0 0
        %1107 = vmatpush2.bf16.msra.mxu0 %v1035
        %1108 = vmatprep.subr.bf16.mxu0 0
        %1109 = vmatpush2.bf16.msra.mxu0 %v1034
        %1110 = vmatprep.subr.bf16.mxu0 0
        %1111 = vmatpush2.bf16.msra.mxu0 %v1033
        %1112 = vmatprep.subr.bf16.mxu0 0
        %1113 = vmatpush2.bf16.msra.mxu0 %v1032
        %1114 = vmatprep.subr.bf16.mxu0 0
        %1115 = vmatpush2.bf16.msra.mxu0 %v1031
        %1116 = vmatprep.subr.bf16.mxu0 0
        %1117 = vmatpush2.bf16.msra.mxu0 %v1030
        %1118 = vmatprep.mubr.bf16.mxu0 %v820
        %1119 = vmatmul.mubr.bf16.gmra.mxu0 %v819
        %v1120 = vpop.f32.mrf.mxu0
        %v1121 = vadd.f32 %v892, %v1120
        %v1122 = vpop.f32.mrf.mxu0
        %v1123 = vpop.f32.mrf.mxu0
        %v1124 = vpop.f32.mrf.mxu0
        %1125 = vdwg.mxu0
        %1126 = vmatprep.subr.bf16.mxu0 0
        %1127 = vmatpush1.bf16.msra.mxu0 %v1045
        %1128 = vmatprep.subr.bf16.mxu0 0
        %1129 = vmatpush1.bf16.msra.mxu0 %v1044
        %1130 = vmatprep.subr.bf16.mxu0 0
        %1131 = vmatpush1.bf16.msra.mxu0 %v1043
        %1132 = vmatprep.subr.bf16.mxu0 0
        %1133 = vmatpush1.bf16.msra.mxu0 %v1042
        %1134 = vmatprep.subr.bf16.mxu0 0
        %1135 = vmatpush1.bf16.msra.mxu0 %v1041
        %1136 = vmatprep.subr.bf16.mxu0 0
        %1137 = vmatpush1.bf16.msra.mxu0 %v1040
        %1138 = vmatprep.subr.bf16.mxu0 0
        %1139 = vmatpush1.bf16.msra.mxu0 %v1039
        %1140 = vmatprep.subr.bf16.mxu0 0
        %1141 = vmatpush1.bf16.msra.mxu0 %v1038
        %1142 = vmatprep.subr.bf16.mxu0 0
        %1143 = vmatpush2.bf16.msra.mxu0 %v1053
        %1144 = vmatprep.subr.bf16.mxu0 0
        %1145 = vmatpush2.bf16.msra.mxu0 %v1052
        %1146 = vmatprep.subr.bf16.mxu0 0
        %1147 = vmatpush2.bf16.msra.mxu0 %v1051
        %1148 = vmatprep.subr.bf16.mxu0 0
        %1149 = vmatpush2.bf16.msra.mxu0 %v1050
        %1150 = vmatprep.subr.bf16.mxu0 0
        %1151 = vmatpush2.bf16.msra.mxu0 %v1049
        %1152 = vmatprep.subr.bf16.mxu0 0
        %1153 = vmatpush2.bf16.msra.mxu0 %v1048
        %1154 = vmatprep.subr.bf16.mxu0 0
        %1155 = vmatpush2.bf16.msra.mxu0 %v1047
        %1156 = vmatprep.subr.bf16.mxu0 0
        %1157 = vmatpush2.bf16.msra.mxu0 %v1046
        %1158 = vmatprep.mubr.bf16.mxu0 %v822
        %1159 = vmatmul.mubr.bf16.gmra.mxu0 %v821
        %v1160 = vpop.f32.mrf.mxu0
        %v1161 = vadd.f32 %v1121, %v1160
        %v1162 = vpop.f32.mrf.mxu0
        %v1163 = vpop.f32.mrf.mxu0
        %v1164 = vpop.f32.mrf.mxu0
        %1165 = vdwg.mxu0
        %v1166 = vmax.f32 %v1161, 0.0
        %v1167 = vpack.c.bf16 %v1166, %v1166
        %v1168 = vld [vmem:[%s11] sm:$0xf]
        %v1169 = vld [vmem:[%s11 + $0x4] sm:$0xf]
        %v1170 = vld [vmem:[%s11 + $0x8] sm:$0xf]
        %v1171 = vld [vmem:[%s11 + $0xc] sm:$0xf]
        %v1172 = vld [vmem:[%s11 + $0x10] sm:$0xf]
        %v1173 = vld [vmem:[%s11 + $0x14] sm:$0xf]
        %v1174 = vld [vmem:[%s11 + $0x18] sm:$0xf]
        %v1175 = vld [vmem:[%s11 + $0x1c] sm:$0xf]
        %v1176 = vld [vmem:[%s11 + $0x20] sm:$0xf]
        %v1177 = vld [vmem:[%s11 + $0x24] sm:$0xf]
        %v1178 = vld [vmem:[%s11 + $0x28] sm:$0xf]
        %v1179 = vld [vmem:[%s11 + $0x2c] sm:$0xf]
        %v1180 = vld [vmem:[%s11 + $0x30] sm:$0xf]
        %v1181 = vld [vmem:[%s11 + $0x34] sm:$0xf]
        %v1182 = vld [vmem:[%s11 + $0x38] sm:$0xf]
        %v1183 = vld [vmem:[%s11 + $0x3c] sm:$0xf]
        %v1184 = vld [vmem:[%s12] sm:$0x1]
        %v1186 = vlaneseq
        %v1187 = vshrl.u32 %v1186, 7
        %v1188 = vsub.s32 0, %v1187
        %v1189 = vrot.slane %v1184, %v1188
        %v1207 = vunpack.c.l.b16 %v1168
        %v1208 = vunpack.c.l.b16 %v1169
        %v1209 = vunpack.c.l.b16 %v1170
        %v1210 = vunpack.c.l.b16 %v1171
        %v1211 = vunpack.c.l.b16 %v1172
        %v1212 = vunpack.c.l.b16 %v1173
        %v1213 = vunpack.c.l.b16 %v1174
        %v1214 = vunpack.c.l.b16 %v1175
        %v1215 = vunpack.c.l.b16 %v1176
        %v1216 = vunpack.c.l.b16 %v1177
        %v1217 = vunpack.c.l.b16 %v1178
        %v1218 = vunpack.c.l.b16 %v1179
        %v1219 = vunpack.c.l.b16 %v1180
        %v1220 = vunpack.c.l.b16 %v1181
        %v1221 = vunpack.c.l.b16 %v1182
        %v1222 = vunpack.c.l.b16 %v1183
        %v1223 = vpack.c.b16 %v1208, %v1207
        %v1224 = vpack.c.b16 %v1210, %v1209
        %v1225 = vpack.c.b16 %v1212, %v1211
        %v1226 = vpack.c.b16 %v1214, %v1213
        %v1227 = vpack.c.b16 %v1216, %v1215
        %v1228 = vpack.c.b16 %v1218, %v1217
        %v1229 = vpack.c.b16 %v1220, %v1219
        %v1230 = vpack.c.b16 %v1222, %v1221
        %1239 = vmatprep.subr.bf16.mxu0 0
        %1240 = vmatpush1.bf16.msra.mxu0 %v1230
        %1241 = vmatprep.subr.bf16.mxu0 0
        %1242 = vmatpush1.bf16.msra.mxu0 %v1229
        %1243 = vmatprep.subr.bf16.mxu0 0
        %1244 = vmatpush1.bf16.msra.mxu0 %v1228
        %1245 = vmatprep.subr.bf16.mxu0 0
        %1246 = vmatpush1.bf16.msra.mxu0 %v1227
        %1247 = vmatprep.subr.bf16.mxu0 0
        %1248 = vmatpush1.bf16.msra.mxu0 %v1226
        %1249 = vmatprep.subr.bf16.mxu0 0
        %1250 = vmatpush1.bf16.msra.mxu0 %v1225
        %1251 = vmatprep.subr.bf16.mxu0 0
        %1252 = vmatpush1.bf16.msra.mxu0 %v1224
        %1253 = vmatprep.subr.bf16.mxu0 0
        %1254 = vmatpush1.bf16.msra.mxu0 %v1223
        %1255 = vmatprep.subr.bf16.mxu0 0
        %1256 = vmatpush2.bf16.msra.mxu0 0
        %1257 = vmatprep.subr.bf16.mxu0 0
        %1258 = vmatpush2.bf16.msra.mxu0 0
        %1259 = vmatprep.subr.bf16.mxu0 0
        %1260 = vmatpush2.bf16.msra.mxu0 0
        %1261 = vmatprep.subr.bf16.mxu0 0
        %1262 = vmatpush2.bf16.msra.mxu0 0
        %1263 = vmatprep.subr.bf16.mxu0 0
        %1264 = vmatpush2.bf16.msra.mxu0 0
        %1265 = vmatprep.subr.bf16.mxu0 0
        %1266 = vmatpush2.bf16.msra.mxu0 0
        %1267 = vmatprep.subr.bf16.mxu0 0
        %1268 = vmatpush2.bf16.msra.mxu0 0
        %1269 = vmatprep.subr.bf16.mxu0 0
        %1270 = vmatpush2.bf16.msra.mxu0 0
        %1271 = vmatprep.mubr.bf16.mxu0 0
        %1272 = vmatmul.mubr.bf16.gmra.mxu0 %v1167
        %v1273 = vpop.f32.mrf.mxu0
        %v1274 = vadd.f32 %v1189, %v1273
        %v1275 = vpop.f32.mrf.mxu0
        %v1276 = vpop.f32.mrf.mxu0
        %v1277 = vpop.f32.mrf.mxu0
        %1278 = vdwg.mxu0
        %v1279 = vmax.f32 %v1274, 0.0
        %v1280 = vld [vmem:[%s507] sm:$0xff]
        %v1281 = vld [vmem:[%s507 + $0x8] sm:$0xf]
        %v1282 = vld [vmem:[%s5] sm:$0xff]
        %v1283 = vld [vmem:[%s5 + $0x8] sm:$0xff]
        %v1284 = vld [vmem:[%s5 + $0x10] sm:$0xff]
        %v1285 = vld [vmem:[%s5 + $0x18] sm:$0xff]
        %v1286 = vld [vmem:[%s5 + $0x20] sm:$0xff]
        %v1287 = vld [vmem:[%s5 + $0x28] sm:$0xff]
        %v1288 = vld [vmem:[%s5 + $0x30] sm:$0xff]
        %v1289 = vld [vmem:[%s5 + $0x38] sm:$0xff]
        %v1290 = vld [vmem:[%s5 + $0x40] sm:$0xff]
        %v1291 = vld [vmem:[%s5 + $0x48] sm:$0xff]
        %v1292 = vld [vmem:[%s5 + $0x50] sm:$0xff]
        %v1293 = vld [vmem:[%s5 + $0x58] sm:$0xff]
        %v1294 = vld [vmem:[%s5 + $0x60] sm:$0xff]
        %v1295 = vld [vmem:[%s5 + $0x68] sm:$0xff]
        %v1296 = vld [vmem:[%s5 + $0x70] sm:$0xff]
        %v1297 = vld [vmem:[%s5 + $0x78] sm:$0xff]
        %v1298 = vld [vmem:[%s5 + $0x80] sm:$0xff]
        %v1299 = vld [vmem:[%s5 + $0x88] sm:$0xff]
        %v1300 = vld [vmem:[%s5 + $0x90] sm:$0xff]
        %v1301 = vld [vmem:[%s5 + $0x98] sm:$0xff]
        %v1302 = vld [vmem:[%s5 + $0xa0] sm:$0xff]
        %v1303 = vld [vmem:[%s5 + $0xa8] sm:$0xff]
        %v1304 = vld [vmem:[%s5 + $0xb0] sm:$0xff]
        %v1305 = vld [vmem:[%s5 + $0xb8] sm:$0xff]
        %v1306 = vld [vmem:[%s5 + $0xc0] sm:$0xff]
        %v1307 = vld [vmem:[%s5 + $0xc8] sm:$0xff]
        %v1308 = vld [vmem:[%s5 + $0xd0] sm:$0xff]
        %v1309 = vld [vmem:[%s5 + $0xd8] sm:$0xff]
        %v1310 = vld [vmem:[%s5 + $0xe0] sm:$0xff]
        %v1311 = vld [vmem:[%s5 + $0xe8] sm:$0xff]
        %v1312 = vld [vmem:[%s5 + $0xf0] sm:$0xff]
        %v1313 = vld [vmem:[%s5 + $0xf8] sm:$0xff]
        %v1314 = vld [vmem:[%s5 + $0x100] sm:$0xff]
        %v1315 = vld [vmem:[%s5 + $0x108] sm:$0xff]
        %v1316 = vld [vmem:[%s5 + $0x110] sm:$0xff]
        %v1317 = vld [vmem:[%s5 + $0x118] sm:$0xff]
        %v1318 = vld [vmem:[%s5 + $0x120] sm:$0xff]
        %v1319 = vld [vmem:[%s5 + $0x128] sm:$0xff]
        %v1320 = vld [vmem:[%s5 + $0x130] sm:$0xff]
        %v1321 = vld [vmem:[%s5 + $0x138] sm:$0xff]
        %v1322 = vld [vmem:[%s5 + $0x140] sm:$0xff]
        %v1323 = vld [vmem:[%s5 + $0x148] sm:$0xff]
        %v1324 = vld [vmem:[%s5 + $0x150] sm:$0xff]
        %v1325 = vld [vmem:[%s5 + $0x158] sm:$0xff]
        %v1326 = vld [vmem:[%s5 + $0x160] sm:$0xff]
        %v1327 = vld [vmem:[%s5 + $0x168] sm:$0xff]
        %v1328 = vld [vmem:[%s5 + $0x170] sm:$0xff]
        %v1329 = vld [vmem:[%s5 + $0x178] sm:$0xff]
        %v1330 = vld [vmem:[%s5 + $0x180] sm:$0xff]
        %v1331 = vld [vmem:[%s5 + $0x188] sm:$0xff]
        %v1332 = vld [vmem:[%s5 + $0x190] sm:$0xff]
        %v1333 = vld [vmem:[%s5 + $0x198] sm:$0xff]
        %v1334 = vld [vmem:[%s5 + $0x1a0] sm:$0xff]
        %v1335 = vld [vmem:[%s5 + $0x1a8] sm:$0xff]
        %v1336 = vld [vmem:[%s5 + $0x1b0] sm:$0xff]
        %v1337 = vld [vmem:[%s5 + $0x1b8] sm:$0xff]
        %v1338 = vld [vmem:[%s5 + $0x1c0] sm:$0xff]
        %v1339 = vld [vmem:[%s5 + $0x1c8] sm:$0xff]
        %v1340 = vld [vmem:[%s5 + $0x1d0] sm:$0xff]
        %v1341 = vld [vmem:[%s5 + $0x1d8] sm:$0xff]
        %v1342 = vld [vmem:[%s5 + $0x1e0] sm:$0xff]
        %v1343 = vld [vmem:[%s5 + $0x1e8] sm:$0xff]
        %v1344 = vld [vmem:[%s5 + $0x1f0] sm:$0xff]
        %v1345 = vld [vmem:[%s5 + $0x1f8] sm:$0xff]
        %v1346 = vld [vmem:[%s5 + $0x200] sm:$0xff]
        %v1347 = vld [vmem:[%s5 + $0x208] sm:$0xff]
        %v1348 = vld [vmem:[%s5 + $0x210] sm:$0xff]
        %v1349 = vld [vmem:[%s5 + $0x218] sm:$0xff]
        %v1350 = vld [vmem:[%s5 + $0x220] sm:$0xff]
        %v1351 = vld [vmem:[%s5 + $0x228] sm:$0xff]
        %v1352 = vld [vmem:[%s5 + $0x230] sm:$0xff]
        %v1353 = vld [vmem:[%s5 + $0x238] sm:$0xff]
        %v1354 = vld [vmem:[%s5 + $0x240] sm:$0xff]
        %v1355 = vld [vmem:[%s5 + $0x248] sm:$0xff]
        %v1356 = vld [vmem:[%s5 + $0x250] sm:$0xff]
        %v1357 = vld [vmem:[%s5 + $0x258] sm:$0xff]
        %v1358 = vld [vmem:[%s5 + $0x260] sm:$0xff]
        %v1359 = vld [vmem:[%s5 + $0x268] sm:$0xff]
        %v1360 = vld [vmem:[%s5 + $0x270] sm:$0xff]
        %v1361 = vld [vmem:[%s5 + $0x278] sm:$0xff]
        %v1362 = vld [vmem:[%s5 + $0x280] sm:$0xff]
        %v1363 = vld [vmem:[%s5 + $0x288] sm:$0xff]
        %v1364 = vld [vmem:[%s5 + $0x290] sm:$0xff]
        %v1365 = vld [vmem:[%s5 + $0x298] sm:$0xff]
        %v1366 = vld [vmem:[%s5 + $0x2a0] sm:$0xff]
        %v1367 = vld [vmem:[%s5 + $0x2a8] sm:$0xff]
        %v1368 = vld [vmem:[%s5 + $0x2b0] sm:$0xff]
        %v1369 = vld [vmem:[%s5 + $0x2b8] sm:$0xff]
        %v1370 = vld [vmem:[%s5 + $0x2c0] sm:$0xff]
        %v1371 = vld [vmem:[%s5 + $0x2c8] sm:$0xff]
        %v1372 = vld [vmem:[%s5 + $0x2d0] sm:$0xff]
        %v1373 = vld [vmem:[%s5 + $0x2d8] sm:$0xff]
        %v1374 = vld [vmem:[%s5 + $0x2e0] sm:$0xff]
        %v1375 = vld [vmem:[%s5 + $0x2e8] sm:$0xff]
        %v1376 = vld [vmem:[%s5 + $0x2f0] sm:$0xff]
        %v1377 = vld [vmem:[%s5 + $0x2f8] sm:$0xff]
        %v1378 = vld [vmem:[%s6] sm:$0xf]
        %v1380 = vlaneseq
        %v1381 = vshrl.u32 %v1380, 7
        %v1382 = vsub.s32 0, %v1381
        %v1383 = vrot.slane %v1378, %v1382
        %v1384 = vlaneseq
        %v1385 = vshrl.u32 %v1384, 7
        %v1386 = vsub.s32 1, %v1385
        %v1387 = vrot.slane %v1378, %v1386
        %v1388 = vlaneseq
        %v1389 = vshrl.u32 %v1388, 7
        %v1390 = vsub.s32 2, %v1389
        %v1391 = vrot.slane %v1378, %v1390
        %v1392 = vlaneseq
        %v1393 = vshrl.u32 %v1392, 7
        %v1394 = vsub.s32 3, %v1393
        %v1395 = vrot.slane %v1378, %v1394
        %v1402 = vunpack.c.l.b16 %v1280
        %v1403 = vunpack.c.h.b16 %v1280
        %v1404 = vunpack.c.l.b16 %v1281
        %v1405 = vpack.c.b16 %v1402, %v1402
        %v1406 = vpack.c.b16 %v1403, %v1403
        %v1407 = vpack.c.b16 %v1404, %v1404
        %v1507 = vunpack.c.l.b16 %v1282
        %v1508 = vunpack.c.h.b16 %v1282
        %v1509 = vunpack.c.l.b16 %v1283
        %v1510 = vunpack.c.h.b16 %v1283
        %v1511 = vunpack.c.l.b16 %v1284
        %v1512 = vunpack.c.h.b16 %v1284
        %v1513 = vunpack.c.l.b16 %v1285
        %v1514 = vunpack.c.h.b16 %v1285
        %v1515 = vunpack.c.l.b16 %v1286
        %v1516 = vunpack.c.h.b16 %v1286
        %v1517 = vunpack.c.l.b16 %v1287
        %v1518 = vunpack.c.h.b16 %v1287
        %v1519 = vunpack.c.l.b16 %v1288
        %v1520 = vunpack.c.h.b16 %v1288
        %v1521 = vunpack.c.l.b16 %v1289
        %v1522 = vunpack.c.h.b16 %v1289
        %v1523 = vunpack.c.l.b16 %v1290
        %v1524 = vunpack.c.h.b16 %v1290
        %v1525 = vunpack.c.l.b16 %v1291
        %v1526 = vunpack.c.h.b16 %v1291
        %v1527 = vunpack.c.l.b16 %v1292
        %v1528 = vunpack.c.h.b16 %v1292
        %v1529 = vunpack.c.l.b16 %v1293
        %v1530 = vunpack.c.h.b16 %v1293
        %v1531 = vunpack.c.l.b16 %v1294
        %v1532 = vunpack.c.h.b16 %v1294
        %v1533 = vunpack.c.l.b16 %v1295
        %v1534 = vunpack.c.h.b16 %v1295
        %v1535 = vunpack.c.l.b16 %v1296
        %v1536 = vunpack.c.h.b16 %v1296
        %v1537 = vunpack.c.l.b16 %v1297
        %v1538 = vunpack.c.h.b16 %v1297
        %v1539 = vunpack.c.l.b16 %v1298
        %v1540 = vunpack.c.h.b16 %v1298
        %v1541 = vunpack.c.l.b16 %v1299
        %v1542 = vunpack.c.h.b16 %v1299
        %v1543 = vunpack.c.l.b16 %v1300
        %v1544 = vunpack.c.h.b16 %v1300
        %v1545 = vunpack.c.l.b16 %v1301
        %v1546 = vunpack.c.h.b16 %v1301
        %v1547 = vunpack.c.l.b16 %v1302
        %v1548 = vunpack.c.h.b16 %v1302
        %v1549 = vunpack.c.l.b16 %v1303
        %v1550 = vunpack.c.h.b16 %v1303
        %v1551 = vunpack.c.l.b16 %v1304
        %v1552 = vunpack.c.h.b16 %v1304
        %v1553 = vunpack.c.l.b16 %v1305
        %v1554 = vunpack.c.h.b16 %v1305
        %v1555 = vunpack.c.l.b16 %v1306
        %v1556 = vunpack.c.h.b16 %v1306
        %v1557 = vunpack.c.l.b16 %v1307
        %v1558 = vunpack.c.h.b16 %v1307
        %v1559 = vunpack.c.l.b16 %v1308
        %v1560 = vunpack.c.h.b16 %v1308
        %v1561 = vunpack.c.l.b16 %v1309
        %v1562 = vunpack.c.h.b16 %v1309
        %v1563 = vunpack.c.l.b16 %v1310
        %v1564 = vunpack.c.h.b16 %v1310
        %v1565 = vunpack.c.l.b16 %v1311
        %v1566 = vunpack.c.h.b16 %v1311
        %v1567 = vunpack.c.l.b16 %v1312
        %v1568 = vunpack.c.h.b16 %v1312
        %v1569 = vunpack.c.l.b16 %v1313
        %v1570 = vunpack.c.h.b16 %v1313
        %v1571 = vunpack.c.l.b16 %v1314
        %v1572 = vunpack.c.h.b16 %v1314
        %v1573 = vunpack.c.l.b16 %v1315
        %v1574 = vunpack.c.h.b16 %v1315
        %v1575 = vunpack.c.l.b16 %v1316
        %v1576 = vunpack.c.h.b16 %v1316
        %v1577 = vunpack.c.l.b16 %v1317
        %v1578 = vunpack.c.h.b16 %v1317
        %v1579 = vunpack.c.l.b16 %v1318
        %v1580 = vunpack.c.h.b16 %v1318
        %v1581 = vunpack.c.l.b16 %v1319
        %v1582 = vunpack.c.h.b16 %v1319
        %v1583 = vunpack.c.l.b16 %v1320
        %v1584 = vunpack.c.h.b16 %v1320
        %v1585 = vunpack.c.l.b16 %v1321
        %v1586 = vunpack.c.h.b16 %v1321
        %v1587 = vunpack.c.l.b16 %v1322
        %v1588 = vunpack.c.h.b16 %v1322
        %v1589 = vunpack.c.l.b16 %v1323
        %v1590 = vunpack.c.h.b16 %v1323
        %v1591 = vunpack.c.l.b16 %v1324
        %v1592 = vunpack.c.h.b16 %v1324
        %v1593 = vunpack.c.l.b16 %v1325
        %v1594 = vunpack.c.h.b16 %v1325
        %v1595 = vunpack.c.l.b16 %v1326
        %v1596 = vunpack.c.h.b16 %v1326
        %v1597 = vunpack.c.l.b16 %v1327
        %v1598 = vunpack.c.h.b16 %v1327
        %v1599 = vunpack.c.l.b16 %v1328
        %v1600 = vunpack.c.h.b16 %v1328
        %v1601 = vunpack.c.l.b16 %v1329
        %v1602 = vunpack.c.h.b16 %v1329
        %v1603 = vunpack.c.l.b16 %v1330
        %v1604 = vunpack.c.h.b16 %v1330
        %v1605 = vunpack.c.l.b16 %v1331
        %v1606 = vunpack.c.h.b16 %v1331
        %v1607 = vunpack.c.l.b16 %v1332
        %v1608 = vunpack.c.h.b16 %v1332
        %v1609 = vunpack.c.l.b16 %v1333
        %v1610 = vunpack.c.h.b16 %v1333
        %v1611 = vunpack.c.l.b16 %v1334
        %v1612 = vunpack.c.h.b16 %v1334
        %v1613 = vunpack.c.l.b16 %v1335
        %v1614 = vunpack.c.h.b16 %v1335
        %v1615 = vunpack.c.l.b16 %v1336
        %v1616 = vunpack.c.h.b16 %v1336
        %v1617 = vunpack.c.l.b16 %v1337
        %v1618 = vunpack.c.h.b16 %v1337
        %v1619 = vunpack.c.l.b16 %v1338
        %v1620 = vunpack.c.h.b16 %v1338
        %v1621 = vunpack.c.l.b16 %v1339
        %v1622 = vunpack.c.h.b16 %v1339
        %v1623 = vunpack.c.l.b16 %v1340
        %v1624 = vunpack.c.h.b16 %v1340
        %v1625 = vunpack.c.l.b16 %v1341
        %v1626 = vunpack.c.h.b16 %v1341
        %v1627 = vunpack.c.l.b16 %v1342
        %v1628 = vunpack.c.h.b16 %v1342
        %v1629 = vunpack.c.l.b16 %v1343
        %v1630 = vunpack.c.h.b16 %v1343
        %v1631 = vunpack.c.l.b16 %v1344
        %v1632 = vunpack.c.h.b16 %v1344
        %v1633 = vunpack.c.l.b16 %v1345
        %v1634 = vunpack.c.h.b16 %v1345
        %v1635 = vunpack.c.l.b16 %v1346
        %v1636 = vunpack.c.h.b16 %v1346
        %v1637 = vunpack.c.l.b16 %v1347
        %v1638 = vunpack.c.h.b16 %v1347
        %v1639 = vunpack.c.l.b16 %v1348
        %v1640 = vunpack.c.h.b16 %v1348
        %v1641 = vunpack.c.l.b16 %v1349
        %v1642 = vunpack.c.h.b16 %v1349
        %v1643 = vunpack.c.l.b16 %v1350
        %v1644 = vunpack.c.h.b16 %v1350
        %v1645 = vunpack.c.l.b16 %v1351
        %v1646 = vunpack.c.h.b16 %v1351
        %v1647 = vunpack.c.l.b16 %v1352
        %v1648 = vunpack.c.h.b16 %v1352
        %v1649 = vunpack.c.l.b16 %v1353
        %v1650 = vunpack.c.h.b16 %v1353
        %v1651 = vunpack.c.l.b16 %v1354
        %v1652 = vunpack.c.h.b16 %v1354
        %v1653 = vunpack.c.l.b16 %v1355
        %v1654 = vunpack.c.h.b16 %v1355
        %v1655 = vunpack.c.l.b16 %v1356
        %v1656 = vunpack.c.h.b16 %v1356
        %v1657 = vunpack.c.l.b16 %v1357
        %v1658 = vunpack.c.h.b16 %v1357
        %v1659 = vunpack.c.l.b16 %v1358
        %v1660 = vunpack.c.h.b16 %v1358
        %v1661 = vunpack.c.l.b16 %v1359
        %v1662 = vunpack.c.h.b16 %v1359
        %v1663 = vunpack.c.l.b16 %v1360
        %v1664 = vunpack.c.h.b16 %v1360
        %v1665 = vunpack.c.l.b16 %v1361
        %v1666 = vunpack.c.h.b16 %v1361
        %v1667 = vunpack.c.l.b16 %v1362
        %v1668 = vunpack.c.h.b16 %v1362
        %v1669 = vunpack.c.l.b16 %v1363
        %v1670 = vunpack.c.h.b16 %v1363
        %v1671 = vunpack.c.l.b16 %v1364
        %v1672 = vunpack.c.h.b16 %v1364
        %v1673 = vunpack.c.l.b16 %v1365
        %v1674 = vunpack.c.h.b16 %v1365
        %v1675 = vunpack.c.l.b16 %v1366
        %v1676 = vunpack.c.h.b16 %v1366
        %v1677 = vunpack.c.l.b16 %v1367
        %v1678 = vunpack.c.h.b16 %v1367
        %v1679 = vunpack.c.l.b16 %v1368
        %v1680 = vunpack.c.h.b16 %v1368
        %v1681 = vunpack.c.l.b16 %v1369
        %v1682 = vunpack.c.h.b16 %v1369
        %v1683 = vunpack.c.l.b16 %v1370
        %v1684 = vunpack.c.h.b16 %v1370
        %v1685 = vunpack.c.l.b16 %v1371
        %v1686 = vunpack.c.h.b16 %v1371
        %v1687 = vunpack.c.l.b16 %v1372
        %v1688 = vunpack.c.h.b16 %v1372
        %v1689 = vunpack.c.l.b16 %v1373
        %v1690 = vunpack.c.h.b16 %v1373
        %v1691 = vunpack.c.l.b16 %v1374
        %v1692 = vunpack.c.h.b16 %v1374
        %v1693 = vunpack.c.l.b16 %v1375
        %v1694 = vunpack.c.h.b16 %v1375
        %v1695 = vunpack.c.l.b16 %v1376
        %v1696 = vunpack.c.h.b16 %v1376
        %v1697 = vunpack.c.l.b16 %v1377
        %v1698 = vunpack.c.h.b16 %v1377
        %v1699 = vpack.c.b16 %v1511, %v1507
        %v1700 = vpack.c.b16 %v1512, %v1508
        %v1701 = vpack.c.b16 %v1513, %v1509
        %v1702 = vpack.c.b16 %v1514, %v1510
        %v1703 = vpack.c.b16 %v1519, %v1515
        %v1704 = vpack.c.b16 %v1520, %v1516
        %v1705 = vpack.c.b16 %v1521, %v1517
        %v1706 = vpack.c.b16 %v1522, %v1518
        %v1707 = vpack.c.b16 %v1527, %v1523
        %v1708 = vpack.c.b16 %v1528, %v1524
        %v1709 = vpack.c.b16 %v1529, %v1525
        %v1710 = vpack.c.b16 %v1530, %v1526
        %v1711 = vpack.c.b16 %v1535, %v1531
        %v1712 = vpack.c.b16 %v1536, %v1532
        %v1713 = vpack.c.b16 %v1537, %v1533
        %v1714 = vpack.c.b16 %v1538, %v1534
        %v1715 = vpack.c.b16 %v1543, %v1539
        %v1716 = vpack.c.b16 %v1544, %v1540
        %v1717 = vpack.c.b16 %v1545, %v1541
        %v1718 = vpack.c.b16 %v1546, %v1542
        %v1719 = vpack.c.b16 %v1551, %v1547
        %v1720 = vpack.c.b16 %v1552, %v1548
        %v1721 = vpack.c.b16 %v1553, %v1549
        %v1722 = vpack.c.b16 %v1554, %v1550
        %v1723 = vpack.c.b16 %v1559, %v1555
        %v1724 = vpack.c.b16 %v1560, %v1556
        %v1725 = vpack.c.b16 %v1561, %v1557
        %v1726 = vpack.c.b16 %v1562, %v1558
        %v1727 = vpack.c.b16 %v1567, %v1563
        %v1728 = vpack.c.b16 %v1568, %v1564
        %v1729 = vpack.c.b16 %v1569, %v1565
        %v1730 = vpack.c.b16 %v1570, %v1566
        %v1731 = vpack.c.b16 %v1575, %v1571
        %v1732 = vpack.c.b16 %v1576, %v1572
        %v1733 = vpack.c.b16 %v1577, %v1573
        %v1734 = vpack.c.b16 %v1578, %v1574
        %v1735 = vpack.c.b16 %v1583, %v1579
        %v1736 = vpack.c.b16 %v1584, %v1580
        %v1737 = vpack.c.b16 %v1585, %v1581
        %v1738 = vpack.c.b16 %v1586, %v1582
        %v1739 = vpack.c.b16 %v1591, %v1587
        %v1740 = vpack.c.b16 %v1592, %v1588
        %v1741 = vpack.c.b16 %v1593, %v1589
        %v1742 = vpack.c.b16 %v1594, %v1590
        %v1743 = vpack.c.b16 %v1599, %v1595
        %v1744 = vpack.c.b16 %v1600, %v1596
        %v1745 = vpack.c.b16 %v1601, %v1597
        %v1746 = vpack.c.b16 %v1602, %v1598
        %v1747 = vpack.c.b16 %v1607, %v1603
        %v1748 = vpack.c.b16 %v1608, %v1604
        %v1749 = vpack.c.b16 %v1609, %v1605
        %v1750 = vpack.c.b16 %v1610, %v1606
        %v1751 = vpack.c.b16 %v1615, %v1611
        %v1752 = vpack.c.b16 %v1616, %v1612
        %v1753 = vpack.c.b16 %v1617, %v1613
        %v1754 = vpack.c.b16 %v1618, %v1614
        %v1755 = vpack.c.b16 %v1623, %v1619
        %v1756 = vpack.c.b16 %v1624, %v1620
        %v1757 = vpack.c.b16 %v1625, %v1621
        %v1758 = vpack.c.b16 %v1626, %v1622
        %v1759 = vpack.c.b16 %v1631, %v1627
        %v1760 = vpack.c.b16 %v1632, %v1628
        %v1761 = vpack.c.b16 %v1633, %v1629
        %v1762 = vpack.c.b16 %v1634, %v1630
        %v1763 = vpack.c.b16 %v1639, %v1635
        %v1764 = vpack.c.b16 %v1640, %v1636
        %v1765 = vpack.c.b16 %v1641, %v1637
        %v1766 = vpack.c.b16 %v1642, %v1638
        %v1767 = vpack.c.b16 %v1647, %v1643
        %v1768 = vpack.c.b16 %v1648, %v1644
        %v1769 = vpack.c.b16 %v1649, %v1645
        %v1770 = vpack.c.b16 %v1650, %v1646
        %v1771 = vpack.c.b16 %v1655, %v1651
        %v1772 = vpack.c.b16 %v1656, %v1652
        %v1773 = vpack.c.b16 %v1657, %v1653
        %v1774 = vpack.c.b16 %v1658, %v1654
        %v1775 = vpack.c.b16 %v1663, %v1659
        %v1776 = vpack.c.b16 %v1664, %v1660
        %v1777 = vpack.c.b16 %v1665, %v1661
        %v1778 = vpack.c.b16 %v1666, %v1662
        %v1779 = vpack.c.b16 %v1671, %v1667
        %v1780 = vpack.c.b16 %v1672, %v1668
        %v1781 = vpack.c.b16 %v1673, %v1669
        %v1782 = vpack.c.b16 %v1674, %v1670
        %v1783 = vpack.c.b16 %v1679, %v1675
        %v1784 = vpack.c.b16 %v1680, %v1676
        %v1785 = vpack.c.b16 %v1681, %v1677
        %v1786 = vpack.c.b16 %v1682, %v1678
        %v1787 = vpack.c.b16 %v1687, %v1683
        %v1788 = vpack.c.b16 %v1688, %v1684
        %v1789 = vpack.c.b16 %v1689, %v1685
        %v1790 = vpack.c.b16 %v1690, %v1686
        %v1791 = vpack.c.b16 %v1695, %v1691
        %v1792 = vpack.c.b16 %v1696, %v1692
        %v1793 = vpack.c.b16 %v1697, %v1693
        %v1794 = vpack.c.b16 %v1698, %v1694
        %1891 = vmatprep.subr.bf16.mxu0 %v1728
        %1892 = vmatpush1.bf16.msra.mxu0 %v1727
        %1893 = vmatprep.subr.bf16.mxu0 %v1724
        %1894 = vmatpush1.bf16.msra.mxu0 %v1723
        %1895 = vmatprep.subr.bf16.mxu0 %v1720
        %1896 = vmatpush1.bf16.msra.mxu0 %v1719
        %1897 = vmatprep.subr.bf16.mxu0 %v1716
        %1898 = vmatpush1.bf16.msra.mxu0 %v1715
        %1899 = vmatprep.subr.bf16.mxu0 %v1712
        %1900 = vmatpush1.bf16.msra.mxu0 %v1711
        %1901 = vmatprep.subr.bf16.mxu0 %v1708
        %1902 = vmatpush1.bf16.msra.mxu0 %v1707
        %1903 = vmatprep.subr.bf16.mxu0 %v1704
        %1904 = vmatpush1.bf16.msra.mxu0 %v1703
        %1905 = vmatprep.subr.bf16.mxu0 %v1700
        %1906 = vmatpush1.bf16.msra.mxu0 %v1699
        %1907 = vmatprep.subr.bf16.mxu0 %v1760
        %1908 = vmatpush2.bf16.msra.mxu0 %v1759
        %1909 = vmatprep.subr.bf16.mxu0 %v1756
        %1910 = vmatpush2.bf16.msra.mxu0 %v1755
        %1911 = vmatprep.subr.bf16.mxu0 %v1752
        %1912 = vmatpush2.bf16.msra.mxu0 %v1751
        %1913 = vmatprep.subr.bf16.mxu0 %v1748
        %1914 = vmatpush2.bf16.msra.mxu0 %v1747
        %1915 = vmatprep.subr.bf16.mxu0 %v1744
        %1916 = vmatpush2.bf16.msra.mxu0 %v1743
        %1917 = vmatprep.subr.bf16.mxu0 %v1740
        %1918 = vmatpush2.bf16.msra.mxu0 %v1739
        %1919 = vmatprep.subr.bf16.mxu0 %v1736
        %1920 = vmatpush2.bf16.msra.mxu0 %v1735
        %1921 = vmatprep.subr.bf16.mxu0 %v1732
        %1922 = vmatpush2.bf16.msra.mxu0 %v1731
        %1923 = vmatprep.mubr.bf16.mxu0 %v1406
        %1924 = vmatmul.mubr.bf16.gmra.mxu0 %v1405
        %v1925 = vpop.f32.mrf.mxu0
        %v1926 = vadd.f32 %v1383, %v1925
        %v1927 = vpop.f32.mrf.mxu0
        %v1928 = vadd.f32 %v1387, %v1927
        %v1929 = vpop.f32.mrf.mxu0
        %v1930 = vpop.f32.mrf.mxu0
        %1931 = vdwg.mxu0
        %1932 = vmatprep.subr.bf16.mxu0 %v1792
        %1933 = vmatpush1.bf16.msra.mxu0 %v1791
        %1934 = vmatprep.subr.bf16.mxu0 %v1788
        %1935 = vmatpush1.bf16.msra.mxu0 %v1787
        %1936 = vmatprep.subr.bf16.mxu0 %v1784
        %1937 = vmatpush1.bf16.msra.mxu0 %v1783
        %1938 = vmatprep.subr.bf16.mxu0 %v1780
        %1939 = vmatpush1.bf16.msra.mxu0 %v1779
        %1940 = vmatprep.subr.bf16.mxu0 %v1776
        %1941 = vmatpush1.bf16.msra.mxu0 %v1775
        %1942 = vmatprep.subr.bf16.mxu0 %v1772
        %1943 = vmatpush1.bf16.msra.mxu0 %v1771
        %1944 = vmatprep.subr.bf16.mxu0 %v1768
        %1945 = vmatpush1.bf16.msra.mxu0 %v1767
        %1946 = vmatprep.subr.bf16.mxu0 %v1764
        %1947 = vmatpush1.bf16.msra.mxu0 %v1763
        %1948 = vmatprep.subr.bf16.mxu0 0
        %1949 = vmatpush2.bf16.msra.mxu0 0
        %1950 = vmatprep.subr.bf16.mxu0 0
        %1951 = vmatpush2.bf16.msra.mxu0 0
        %1952 = vmatprep.subr.bf16.mxu0 0
        %1953 = vmatpush2.bf16.msra.mxu0 0
        %1954 = vmatprep.subr.bf16.mxu0 0
        %1955 = vmatpush2.bf16.msra.mxu0 0
        %1956 = vmatprep.subr.bf16.mxu0 0
        %1957 = vmatpush2.bf16.msra.mxu0 0
        %1958 = vmatprep.subr.bf16.mxu0 0
        %1959 = vmatpush2.bf16.msra.mxu0 0
        %1960 = vmatprep.subr.bf16.mxu0 0
        %1961 = vmatpush2.bf16.msra.mxu0 0
        %1962 = vmatprep.subr.bf16.mxu0 0
        %1963 = vmatpush2.bf16.msra.mxu0 0
        %1964 = vmatprep.mubr.bf16.mxu0 0
        %1965 = vmatmul.mubr.bf16.gmra.mxu0 %v1407
        %v1966 = vpop.f32.mrf.mxu0
        %v1967 = vadd.f32 %v1926, %v1966
        %v1968 = vpop.f32.mrf.mxu0
        %v1969 = vadd.f32 %v1928, %v1968
        %v1970 = vpop.f32.mrf.mxu0
        %v1971 = vpop.f32.mrf.mxu0
        %1972 = vdwg.mxu0
        %1973 = vmatprep.subr.bf16.mxu0 %v1730
        %1974 = vmatpush1.bf16.msra.mxu0 %v1729
        %1975 = vmatprep.subr.bf16.mxu0 %v1726
        %1976 = vmatpush1.bf16.msra.mxu0 %v1725
        %1977 = vmatprep.subr.bf16.mxu0 %v1722
        %1978 = vmatpush1.bf16.msra.mxu0 %v1721
        %1979 = vmatprep.subr.bf16.mxu0 %v1718
        %1980 = vmatpush1.bf16.msra.mxu0 %v1717
        %1981 = vmatprep.subr.bf16.mxu0 %v1714
        %1982 = vmatpush1.bf16.msra.mxu0 %v1713
        %1983 = vmatprep.subr.bf16.mxu0 %v1710
        %1984 = vmatpush1.bf16.msra.mxu0 %v1709
        %1985 = vmatprep.subr.bf16.mxu0 %v1706
        %1986 = vmatpush1.bf16.msra.mxu0 %v1705
        %1987 = vmatprep.subr.bf16.mxu0 %v1702
        %1988 = vmatpush1.bf16.msra.mxu0 %v1701
        %1989 = vmatprep.subr.bf16.mxu0 %v1762
        %1990 = vmatpush2.bf16.msra.mxu0 %v1761
        %1991 = vmatprep.subr.bf16.mxu0 %v1758
        %1992 = vmatpush2.bf16.msra.mxu0 %v1757
        %1993 = vmatprep.subr.bf16.mxu0 %v1754
        %1994 = vmatpush2.bf16.msra.mxu0 %v1753
        %1995 = vmatprep.subr.bf16.mxu0 %v1750
        %1996 = vmatpush2.bf16.msra.mxu0 %v1749
        %1997 = vmatprep.subr.bf16.mxu0 %v1746
        %1998 = vmatpush2.bf16.msra.mxu0 %v1745
        %1999 = vmatprep.subr.bf16.mxu0 %v1742
        %2000 = vmatpush2.bf16.msra.mxu0 %v1741
        %2001 = vmatprep.subr.bf16.mxu0 %v1738
        %2002 = vmatpush2.bf16.msra.mxu0 %v1737
        %2003 = vmatprep.subr.bf16.mxu0 %v1734
        %2004 = vmatpush2.bf16.msra.mxu0 %v1733
        %2005 = vmatprep.mubr.bf16.mxu0 %v1406
        %2006 = vmatmul.mubr.bf16.gmra.mxu0 %v1405
        %v2007 = vpop.f32.mrf.mxu0
        %v2008 = vadd.f32 %v1391, %v2007
        %v2009 = vpop.f32.mrf.mxu0
        %v2010 = vadd.f32 %v1395, %v2009
        %v2011 = vpop.f32.mrf.mxu0
        %v2012 = vpop.f32.mrf.mxu0
        %2013 = vdwg.mxu0
        %2014 = vmatprep.subr.bf16.mxu0 %v1794
        %2015 = vmatpush1.bf16.msra.mxu0 %v1793
        %2016 = vmatprep.subr.bf16.mxu0 %v1790
        %2017 = vmatpush1.bf16.msra.mxu0 %v1789
        %2018 = vmatprep.subr.bf16.mxu0 %v1786
        %2019 = vmatpush1.bf16.msra.mxu0 %v1785
        %2020 = vmatprep.subr.bf16.mxu0 %v1782
        %2021 = vmatpush1.bf16.msra.mxu0 %v1781
        %2022 = vmatprep.subr.bf16.mxu0 %v1778
        %2023 = vmatpush1.bf16.msra.mxu0 %v1777
        %2024 = vmatprep.subr.bf16.mxu0 %v1774
        %2025 = vmatpush1.bf16.msra.mxu0 %v1773
        %2026 = vmatprep.subr.bf16.mxu0 %v1770
        %2027 = vmatpush1.bf16.msra.mxu0 %v1769
        %2028 = vmatprep.subr.bf16.mxu0 %v1766
        %2029 = vmatpush1.bf16.msra.mxu0 %v1765
        %2030 = vmatprep.subr.bf16.mxu0 0
        %2031 = vmatpush2.bf16.msra.mxu0 0
        %2032 = vmatprep.subr.bf16.mxu0 0
        %2033 = vmatpush2.bf16.msra.mxu0 0
        %2034 = vmatprep.subr.bf16.mxu0 0
        %2035 = vmatpush2.bf16.msra.mxu0 0
        %2036 = vmatprep.subr.bf16.mxu0 0
        %2037 = vmatpush2.bf16.msra.mxu0 0
        %2038 = vmatprep.subr.bf16.mxu0 0
        %2039 = vmatpush2.bf16.msra.mxu0 0
        %2040 = vmatprep.subr.bf16.mxu0 0
        %2041 = vmatpush2.bf16.msra.mxu0 0
        %2042 = vmatprep.subr.bf16.mxu0 0
        %2043 = vmatpush2.bf16.msra.mxu0 0
        %2044 = vmatprep.subr.bf16.mxu0 0
        %2045 = vmatpush2.bf16.msra.mxu0 0
        %2046 = vmatprep.mubr.bf16.mxu0 0
        %2047 = vmatmul.mubr.bf16.gmra.mxu0 %v1407
        %v2048 = vpop.f32.mrf.mxu0
        %v2049 = vadd.f32 %v2008, %v2048
        %v2050 = vpop.f32.mrf.mxu0
        %v2051 = vadd.f32 %v2010, %v2050
        %v2052 = vpop.f32.mrf.mxu0
        %v2053 = vpop.f32.mrf.mxu0
        %2054 = vdwg.mxu0
        %v2055 = vmax.f32 %v1967, 0.0
        %v2056 = vmax.f32 %v1969, 0.0
        %v2057 = vmax.f32 %v2049, 0.0
        %v2058 = vmax.f32 %v2051, 0.0
        %v2059 = vpack.c.bf16 %v2055, %v2055
        %v2060 = vpack.c.bf16 %v2056, %v2056
        %v2061 = vpack.c.bf16 %v2057, %v2057
        %v2062 = vpack.c.bf16 %v2058, %v2058
        %2063 = vmatprep.subr.bf16.mxu0 0
        %2064 = vmatpush1.bf16.msra.mxu0 %v1029
        %2065 = vmatprep.subr.bf16.mxu0 0
        %2066 = vmatpush1.bf16.msra.mxu0 %v1028
        %2067 = vmatprep.subr.bf16.mxu0 0
        %2068 = vmatpush1.bf16.msra.mxu0 %v1027
        %2069 = vmatprep.subr.bf16.mxu0 0
        %2070 = vmatpush1.bf16.msra.mxu0 %v1026
        %2071 = vmatprep.subr.bf16.mxu0 0
        %2072 = vmatpush1.bf16.msra.mxu0 %v1025
        %2073 = vmatprep.subr.bf16.mxu0 0
        %2074 = vmatpush1.bf16.msra.mxu0 %v1024
        %2075 = vmatprep.subr.bf16.mxu0 0
        %2076 = vmatpush1.bf16.msra.mxu0 %v1023
        %2077 = vmatprep.subr.bf16.mxu0 0
        %2078 = vmatpush1.bf16.msra.mxu0 %v1022
        %2079 = vmatprep.subr.bf16.mxu0 0
        %2080 = vmatpush2.bf16.msra.mxu0 %v1037
        %2081 = vmatprep.subr.bf16.mxu0 0
        %2082 = vmatpush2.bf16.msra.mxu0 %v1036
        %2083 = vmatprep.subr.bf16.mxu0 0
        %2084 = vmatpush2.bf16.msra.mxu0 %v1035
        %2085 = vmatprep.subr.bf16.mxu0 0
        %2086 = vmatpush2.bf16.msra.mxu0 %v1034
        %2087 = vmatprep.subr.bf16.mxu0 0
        %2088 = vmatpush2.bf16.msra.mxu0 %v1033
        %2089 = vmatprep.subr.bf16.mxu0 0
        %2090 = vmatpush2.bf16.msra.mxu0 %v1032
        %2091 = vmatprep.subr.bf16.mxu0 0
        %2092 = vmatpush2.bf16.msra.mxu0 %v1031
        %2093 = vmatprep.subr.bf16.mxu0 0
        %2094 = vmatpush2.bf16.msra.mxu0 %v1030
        %2095 = vmatprep.mubr.bf16.mxu0 %v2060
        %2096 = vmatmul.mubr.bf16.gmra.mxu0 %v2059
        %v2097 = vpop.f32.mrf.mxu0
        %v2098 = vadd.f32 %v892, %v2097
        %v2099 = vpop.f32.mrf.mxu0
        %v2100 = vpop.f32.mrf.mxu0
        %v2101 = vpop.f32.mrf.mxu0
        %2102 = vdwg.mxu0
        %2103 = vmatprep.subr.bf16.mxu0 0
        %2104 = vmatpush1.bf16.msra.mxu0 %v1045
        %2105 = vmatprep.subr.bf16.mxu0 0
        %2106 = vmatpush1.bf16.msra.mxu0 %v1044
        %2107 = vmatprep.subr.bf16.mxu0 0
        %2108 = vmatpush1.bf16.msra.mxu0 %v1043
        %2109 = vmatprep.subr.bf16.mxu0 0
        %2110 = vmatpush1.bf16.msra.mxu0 %v1042
        %2111 = vmatprep.subr.bf16.mxu0 0
        %2112 = vmatpush1.bf16.msra.mxu0 %v1041
        %2113 = vmatprep.subr.bf16.mxu0 0
        %2114 = vmatpush1.bf16.msra.mxu0 %v1040
        %2115 = vmatprep.subr.bf16.mxu0 0
        %2116 = vmatpush1.bf16.msra.mxu0 %v1039
        %2117 = vmatprep.subr.bf16.mxu0 0
        %2118 = vmatpush1.bf16.msra.mxu0 %v1038
        %2119 = vmatprep.subr.bf16.mxu0 0
        %2120 = vmatpush2.bf16.msra.mxu0 %v1053
        %2121 = vmatprep.subr.bf16.mxu0 0
        %2122 = vmatpush2.bf16.msra.mxu0 %v1052
        %2123 = vmatprep.subr.bf16.mxu0 0
        %2124 = vmatpush2.bf16.msra.mxu0 %v1051
        %2125 = vmatprep.subr.bf16.mxu0 0
        %2126 = vmatpush2.bf16.msra.mxu0 %v1050
        %2127 = vmatprep.subr.bf16.mxu0 0
        %2128 = vmatpush2.bf16.msra.mxu0 %v1049
        %2129 = vmatprep.subr.bf16.mxu0 0
        %2130 = vmatpush2.bf16.msra.mxu0 %v1048
        %2131 = vmatprep.subr.bf16.mxu0 0
        %2132 = vmatpush2.bf16.msra.mxu0 %v1047
        %2133 = vmatprep.subr.bf16.mxu0 0
        %2134 = vmatpush2.bf16.msra.mxu0 %v1046
        %2135 = vmatprep.mubr.bf16.mxu0 %v2062
        %2136 = vmatmul.mubr.bf16.gmra.mxu0 %v2061
        %v2137 = vpop.f32.mrf.mxu0
        %v2138 = vadd.f32 %v2098, %v2137
        %v2139 = vpop.f32.mrf.mxu0
        %v2140 = vpop.f32.mrf.mxu0
        %v2141 = vpop.f32.mrf.mxu0
        %2142 = vdwg.mxu0
        %v2143 = vmax.f32 %v2138, 0.0
        %v2144 = vpack.c.bf16 %v2143, %v2143
        %2145 = vmatprep.subr.bf16.mxu0 0
        %2146 = vmatpush1.bf16.msra.mxu0 %v1230
        %2147 = vmatprep.subr.bf16.mxu0 0
        %2148 = vmatpush1.bf16.msra.mxu0 %v1229
        %2149 = vmatprep.subr.bf16.mxu0 0
        %2150 = vmatpush1.bf16.msra.mxu0 %v1228
        %2151 = vmatprep.subr.bf16.mxu0 0
        %2152 = vmatpush1.bf16.msra.mxu0 %v1227
        %2153 = vmatprep.subr.bf16.mxu0 0
        %2154 = vmatpush1.bf16.msra.mxu0 %v1226
        %2155 = vmatprep.subr.bf16.mxu0 0
        %2156 = vmatpush1.bf16.msra.mxu0 %v1225
        %2157 = vmatprep.subr.bf16.mxu0 0
        %2158 = vmatpush1.bf16.msra.mxu0 %v1224
        %2159 = vmatprep.subr.bf16.mxu0 0
        %2160 = vmatpush1.bf16.msra.mxu0 %v1223
        %2161 = vmatprep.subr.bf16.mxu0 0
        %2162 = vmatpush2.bf16.msra.mxu0 0
        %2163 = vmatprep.subr.bf16.mxu0 0
        %2164 = vmatpush2.bf16.msra.mxu0 0
        %2165 = vmatprep.subr.bf16.mxu0 0
        %2166 = vmatpush2.bf16.msra.mxu0 0
        %2167 = vmatprep.subr.bf16.mxu0 0
        %2168 = vmatpush2.bf16.msra.mxu0 0
        %2169 = vmatprep.subr.bf16.mxu0 0
        %2170 = vmatpush2.bf16.msra.mxu0 0
        %2171 = vmatprep.subr.bf16.mxu0 0
        %2172 = vmatpush2.bf16.msra.mxu0 0
        %2173 = vmatprep.subr.bf16.mxu0 0
        %2174 = vmatpush2.bf16.msra.mxu0 0
        %2175 = vmatprep.subr.bf16.mxu0 0
        %2176 = vmatpush2.bf16.msra.mxu0 0
        %2177 = vmatprep.mubr.bf16.mxu0 0
        %2178 = vmatmul.mubr.bf16.gmra.mxu0 %v2144
        %v2179 = vpop.f32.mrf.mxu0
        %v2180 = vadd.f32 %v1189, %v2179
        %v2181 = vpop.f32.mrf.mxu0
        %v2182 = vpop.f32.mrf.mxu0
        %v2183 = vpop.f32.mrf.mxu0
        %2184 = vdwg.mxu0
        %v2185 = vmax.f32 %v2180, 0.0
        %v2186 = vld [vmem:[%s512] sm:$0xff]
        %v2187 = vld [vmem:[%s7] sm:$0xff]
        %v2188 = vld [vmem:[%s7 + $0x8] sm:$0xff]
        %v2189 = vld [vmem:[%s7 + $0x10] sm:$0xff]
        %v2190 = vld [vmem:[%s7 + $0x18] sm:$0xff]
        %v2191 = vld [vmem:[%s7 + $0x20] sm:$0xff]
        %v2192 = vld [vmem:[%s7 + $0x28] sm:$0xff]
        %v2193 = vld [vmem:[%s7 + $0x30] sm:$0xff]
        %v2194 = vld [vmem:[%s7 + $0x38] sm:$0xff]
        %v2195 = vld [vmem:[%s7 + $0x40] sm:$0xff]
        %v2196 = vld [vmem:[%s7 + $0x48] sm:$0xff]
        %v2197 = vld [vmem:[%s7 + $0x50] sm:$0xff]
        %v2198 = vld [vmem:[%s7 + $0x58] sm:$0xff]
        %v2199 = vld [vmem:[%s7 + $0x60] sm:$0xff]
        %v2200 = vld [vmem:[%s7 + $0x68] sm:$0xff]
        %v2201 = vld [vmem:[%s7 + $0x70] sm:$0xff]
        %v2202 = vld [vmem:[%s7 + $0x78] sm:$0xff]
        %v2203 = vld [vmem:[%s7 + $0x80] sm:$0xff]
        %v2204 = vld [vmem:[%s7 + $0x88] sm:$0xff]
        %v2205 = vld [vmem:[%s7 + $0x90] sm:$0xff]
        %v2206 = vld [vmem:[%s7 + $0x98] sm:$0xff]
        %v2207 = vld [vmem:[%s7 + $0xa0] sm:$0xff]
        %v2208 = vld [vmem:[%s7 + $0xa8] sm:$0xff]
        %v2209 = vld [vmem:[%s7 + $0xb0] sm:$0xff]
        %v2210 = vld [vmem:[%s7 + $0xb8] sm:$0xff]
        %v2211 = vld [vmem:[%s7 + $0xc0] sm:$0xff]
        %v2212 = vld [vmem:[%s7 + $0xc8] sm:$0xff]
        %v2213 = vld [vmem:[%s7 + $0xd0] sm:$0xff]
        %v2214 = vld [vmem:[%s7 + $0xd8] sm:$0xff]
        %v2215 = vld [vmem:[%s7 + $0xe0] sm:$0xff]
        %v2216 = vld [vmem:[%s7 + $0xe8] sm:$0xff]
        %v2217 = vld [vmem:[%s7 + $0xf0] sm:$0xff]
        %v2218 = vld [vmem:[%s7 + $0xf8] sm:$0xff]
        %v2219 = vld [vmem:[%s7 + $0x100] sm:$0xff]
        %v2220 = vld [vmem:[%s7 + $0x108] sm:$0xff]
        %v2221 = vld [vmem:[%s7 + $0x110] sm:$0xff]
        %v2222 = vld [vmem:[%s7 + $0x118] sm:$0xff]
        %v2223 = vld [vmem:[%s7 + $0x120] sm:$0xff]
        %v2224 = vld [vmem:[%s7 + $0x128] sm:$0xff]
        %v2225 = vld [vmem:[%s7 + $0x130] sm:$0xff]
        %v2226 = vld [vmem:[%s7 + $0x138] sm:$0xff]
        %v2227 = vld [vmem:[%s7 + $0x140] sm:$0xff]
        %v2228 = vld [vmem:[%s7 + $0x148] sm:$0xff]
        %v2229 = vld [vmem:[%s7 + $0x150] sm:$0xff]
        %v2230 = vld [vmem:[%s7 + $0x158] sm:$0xff]
        %v2231 = vld [vmem:[%s7 + $0x160] sm:$0xff]
        %v2232 = vld [vmem:[%s7 + $0x168] sm:$0xff]
        %v2233 = vld [vmem:[%s7 + $0x170] sm:$0xff]
        %v2234 = vld [vmem:[%s7 + $0x178] sm:$0xff]
        %v2235 = vld [vmem:[%s7 + $0x180] sm:$0xff]
        %v2236 = vld [vmem:[%s7 + $0x188] sm:$0xff]
        %v2237 = vld [vmem:[%s7 + $0x190] sm:$0xff]
        %v2238 = vld [vmem:[%s7 + $0x198] sm:$0xff]
        %v2239 = vld [vmem:[%s7 + $0x1a0] sm:$0xff]
        %v2240 = vld [vmem:[%s7 + $0x1a8] sm:$0xff]
        %v2241 = vld [vmem:[%s7 + $0x1b0] sm:$0xff]
        %v2242 = vld [vmem:[%s7 + $0x1b8] sm:$0xff]
        %v2243 = vld [vmem:[%s7 + $0x1c0] sm:$0xff]
        %v2244 = vld [vmem:[%s7 + $0x1c8] sm:$0xff]
        %v2245 = vld [vmem:[%s7 + $0x1d0] sm:$0xff]
        %v2246 = vld [vmem:[%s7 + $0x1d8] sm:$0xff]
        %v2247 = vld [vmem:[%s7 + $0x1e0] sm:$0xff]
        %v2248 = vld [vmem:[%s7 + $0x1e8] sm:$0xff]
        %v2249 = vld [vmem:[%s7 + $0x1f0] sm:$0xff]
        %v2250 = vld [vmem:[%s7 + $0x1f8] sm:$0xff]
        %v2251 = vld [vmem:[%s8] sm:$0xf]
        %v2253 = vlaneseq
        %v2254 = vshrl.u32 %v2253, 7
        %v2255 = vsub.s32 0, %v2254
        %v2256 = vrot.slane %v2251, %v2255
        %v2257 = vlaneseq
        %v2258 = vshrl.u32 %v2257, 7
        %v2259 = vsub.s32 1, %v2258
        %v2260 = vrot.slane %v2251, %v2259
        %v2261 = vlaneseq
        %v2262 = vshrl.u32 %v2261, 7
        %v2263 = vsub.s32 2, %v2262
        %v2264 = vrot.slane %v2251, %v2263
        %v2265 = vlaneseq
        %v2266 = vshrl.u32 %v2265, 7
        %v2267 = vsub.s32 3, %v2266
        %v2268 = vrot.slane %v2251, %v2267
        %v2274 = vunpack.c.l.b16 %v2186
        %v2275 = vunpack.c.h.b16 %v2186
        %v2276 = vpack.c.b16 %v2274, %v2274
        %v2277 = vpack.c.b16 %v2275, %v2275
        %v2344 = vunpack.c.l.b16 %v2187
        %v2345 = vunpack.c.h.b16 %v2187
        %v2346 = vunpack.c.l.b16 %v2188
        %v2347 = vunpack.c.h.b16 %v2188
        %v2348 = vunpack.c.l.b16 %v2189
        %v2349 = vunpack.c.h.b16 %v2189
        %v2350 = vunpack.c.l.b16 %v2190
        %v2351 = vunpack.c.h.b16 %v2190
        %v2352 = vunpack.c.l.b16 %v2191
        %v2353 = vunpack.c.h.b16 %v2191
        %v2354 = vunpack.c.l.b16 %v2192
        %v2355 = vunpack.c.h.b16 %v2192
        %v2356 = vunpack.c.l.b16 %v2193
        %v2357 = vunpack.c.h.b16 %v2193
        %v2358 = vunpack.c.l.b16 %v2194
        %v2359 = vunpack.c.h.b16 %v2194
        %v2360 = vunpack.c.l.b16 %v2195
        %v2361 = vunpack.c.h.b16 %v2195
        %v2362 = vunpack.c.l.b16 %v2196
        %v2363 = vunpack.c.h.b16 %v2196
        %v2364 = vunpack.c.l.b16 %v2197
        %v2365 = vunpack.c.h.b16 %v2197
        %v2366 = vunpack.c.l.b16 %v2198
        %v2367 = vunpack.c.h.b16 %v2198
        %v2368 = vunpack.c.l.b16 %v2199
        %v2369 = vunpack.c.h.b16 %v2199
        %v2370 = vunpack.c.l.b16 %v2200
        %v2371 = vunpack.c.h.b16 %v2200
        %v2372 = vunpack.c.l.b16 %v2201
        %v2373 = vunpack.c.h.b16 %v2201
        %v2374 = vunpack.c.l.b16 %v2202
        %v2375 = vunpack.c.h.b16 %v2202
        %v2376 = vunpack.c.l.b16 %v2203
        %v2377 = vunpack.c.h.b16 %v2203
        %v2378 = vunpack.c.l.b16 %v2204
        %v2379 = vunpack.c.h.b16 %v2204
        %v2380 = vunpack.c.l.b16 %v2205
        %v2381 = vunpack.c.h.b16 %v2205
        %v2382 = vunpack.c.l.b16 %v2206
        %v2383 = vunpack.c.h.b16 %v2206
        %v2384 = vunpack.c.l.b16 %v2207
        %v2385 = vunpack.c.h.b16 %v2207
        %v2386 = vunpack.c.l.b16 %v2208
        %v2387 = vunpack.c.h.b16 %v2208
        %v2388 = vunpack.c.l.b16 %v2209
        %v2389 = vunpack.c.h.b16 %v2209
        %v2390 = vunpack.c.l.b16 %v2210
        %v2391 = vunpack.c.h.b16 %v2210
        %v2392 = vunpack.c.l.b16 %v2211
        %v2393 = vunpack.c.h.b16 %v2211
        %v2394 = vunpack.c.l.b16 %v2212
        %v2395 = vunpack.c.h.b16 %v2212
        %v2396 = vunpack.c.l.b16 %v2213
        %v2397 = vunpack.c.h.b16 %v2213
        %v2398 = vunpack.c.l.b16 %v2214
        %v2399 = vunpack.c.h.b16 %v2214
        %v2400 = vunpack.c.l.b16 %v2215
        %v2401 = vunpack.c.h.b16 %v2215
        %v2402 = vunpack.c.l.b16 %v2216
        %v2403 = vunpack.c.h.b16 %v2216
        %v2404 = vunpack.c.l.b16 %v2217
        %v2405 = vunpack.c.h.b16 %v2217
        %v2406 = vunpack.c.l.b16 %v2218
        %v2407 = vunpack.c.h.b16 %v2218
        %v2408 = vunpack.c.l.b16 %v2219
        %v2409 = vunpack.c.h.b16 %v2219
        %v2410 = vunpack.c.l.b16 %v2220
        %v2411 = vunpack.c.h.b16 %v2220
        %v2412 = vunpack.c.l.b16 %v2221
        %v2413 = vunpack.c.h.b16 %v2221
        %v2414 = vunpack.c.l.b16 %v2222
        %v2415 = vunpack.c.h.b16 %v2222
        %v2416 = vunpack.c.l.b16 %v2223
        %v2417 = vunpack.c.h.b16 %v2223
        %v2418 = vunpack.c.l.b16 %v2224
        %v2419 = vunpack.c.h.b16 %v2224
        %v2420 = vunpack.c.l.b16 %v2225
        %v2421 = vunpack.c.h.b16 %v2225
        %v2422 = vunpack.c.l.b16 %v2226
        %v2423 = vunpack.c.h.b16 %v2226
        %v2424 = vunpack.c.l.b16 %v2227
        %v2425 = vunpack.c.h.b16 %v2227
        %v2426 = vunpack.c.l.b16 %v2228
        %v2427 = vunpack.c.h.b16 %v2228
        %v2428 = vunpack.c.l.b16 %v2229
        %v2429 = vunpack.c.h.b16 %v2229
        %v2430 = vunpack.c.l.b16 %v2230
        %v2431 = vunpack.c.h.b16 %v2230
        %v2432 = vunpack.c.l.b16 %v2231
        %v2433 = vunpack.c.h.b16 %v2231
        %v2434 = vunpack.c.l.b16 %v2232
        %v2435 = vunpack.c.h.b16 %v2232
        %v2436 = vunpack.c.l.b16 %v2233
        %v2437 = vunpack.c.h.b16 %v2233
        %v2438 = vunpack.c.l.b16 %v2234
        %v2439 = vunpack.c.h.b16 %v2234
        %v2440 = vunpack.c.l.b16 %v2235
        %v2441 = vunpack.c.h.b16 %v2235
        %v2442 = vunpack.c.l.b16 %v2236
        %v2443 = vunpack.c.h.b16 %v2236
        %v2444 = vunpack.c.l.b16 %v2237
        %v2445 = vunpack.c.h.b16 %v2237
        %v2446 = vunpack.c.l.b16 %v2238
        %v2447 = vunpack.c.h.b16 %v2238
        %v2448 = vunpack.c.l.b16 %v2239
        %v2449 = vunpack.c.h.b16 %v2239
        %v2450 = vunpack.c.l.b16 %v2240
        %v2451 = vunpack.c.h.b16 %v2240
        %v2452 = vunpack.c.l.b16 %v2241
        %v2453 = vunpack.c.h.b16 %v2241
        %v2454 = vunpack.c.l.b16 %v2242
        %v2455 = vunpack.c.h.b16 %v2242
        %v2456 = vunpack.c.l.b16 %v2243
        %v2457 = vunpack.c.h.b16 %v2243
        %v2458 = vunpack.c.l.b16 %v2244
        %v2459 = vunpack.c.h.b16 %v2244
        %v2460 = vunpack.c.l.b16 %v2245
        %v2461 = vunpack.c.h.b16 %v2245
        %v2462 = vunpack.c.l.b16 %v2246
        %v2463 = vunpack.c.h.b16 %v2246
        %v2464 = vunpack.c.l.b16 %v2247
        %v2465 = vunpack.c.h.b16 %v2247
        %v2466 = vunpack.c.l.b16 %v2248
        %v2467 = vunpack.c.h.b16 %v2248
        %v2468 = vunpack.c.l.b16 %v2249
        %v2469 = vunpack.c.h.b16 %v2249
        %v2470 = vunpack.c.l.b16 %v2250
        %v2471 = vunpack.c.h.b16 %v2250
        %v2472 = vpack.c.b16 %v2348, %v2344
        %v2473 = vpack.c.b16 %v2349, %v2345
        %v2474 = vpack.c.b16 %v2350, %v2346
        %v2475 = vpack.c.b16 %v2351, %v2347
        %v2476 = vpack.c.b16 %v2356, %v2352
        %v2477 = vpack.c.b16 %v2357, %v2353
        %v2478 = vpack.c.b16 %v2358, %v2354
        %v2479 = vpack.c.b16 %v2359, %v2355
        %v2480 = vpack.c.b16 %v2364, %v2360
        %v2481 = vpack.c.b16 %v2365, %v2361
        %v2482 = vpack.c.b16 %v2366, %v2362
        %v2483 = vpack.c.b16 %v2367, %v2363
        %v2484 = vpack.c.b16 %v2372, %v2368
        %v2485 = vpack.c.b16 %v2373, %v2369
        %v2486 = vpack.c.b16 %v2374, %v2370
        %v2487 = vpack.c.b16 %v2375, %v2371
        %v2488 = vpack.c.b16 %v2380, %v2376
        %v2489 = vpack.c.b16 %v2381, %v2377
        %v2490 = vpack.c.b16 %v2382, %v2378
        %v2491 = vpack.c.b16 %v2383, %v2379
        %v2492 = vpack.c.b16 %v2388, %v2384
        %v2493 = vpack.c.b16 %v2389, %v2385
        %v2494 = vpack.c.b16 %v2390, %v2386
        %v2495 = vpack.c.b16 %v2391, %v2387
        %v2496 = vpack.c.b16 %v2396, %v2392
        %v2497 = vpack.c.b16 %v2397, %v2393
        %v2498 = vpack.c.b16 %v2398, %v2394
        %v2499 = vpack.c.b16 %v2399, %v2395
        %v2500 = vpack.c.b16 %v2404, %v2400
        %v2501 = vpack.c.b16 %v2405, %v2401
        %v2502 = vpack.c.b16 %v2406, %v2402
        %v2503 = vpack.c.b16 %v2407, %v2403
        %v2504 = vpack.c.b16 %v2412, %v2408
        %v2505 = vpack.c.b16 %v2413, %v2409
        %v2506 = vpack.c.b16 %v2414, %v2410
        %v2507 = vpack.c.b16 %v2415, %v2411
        %v2508 = vpack.c.b16 %v2420, %v2416
        %v2509 = vpack.c.b16 %v2421, %v2417
        %v2510 = vpack.c.b16 %v2422, %v2418
        %v2511 = vpack.c.b16 %v2423, %v2419
        %v2512 = vpack.c.b16 %v2428, %v2424
        %v2513 = vpack.c.b16 %v2429, %v2425
        %v2514 = vpack.c.b16 %v2430, %v2426
        %v2515 = vpack.c.b16 %v2431, %v2427
        %v2516 = vpack.c.b16 %v2436, %v2432
        %v2517 = vpack.c.b16 %v2437, %v2433
        %v2518 = vpack.c.b16 %v2438, %v2434
        %v2519 = vpack.c.b16 %v2439, %v2435
        %v2520 = vpack.c.b16 %v2444, %v2440
        %v2521 = vpack.c.b16 %v2445, %v2441
        %v2522 = vpack.c.b16 %v2446, %v2442
        %v2523 = vpack.c.b16 %v2447, %v2443
        %v2524 = vpack.c.b16 %v2452, %v2448
        %v2525 = vpack.c.b16 %v2453, %v2449
        %v2526 = vpack.c.b16 %v2454, %v2450
        %v2527 = vpack.c.b16 %v2455, %v2451
        %v2528 = vpack.c.b16 %v2460, %v2456
        %v2529 = vpack.c.b16 %v2461, %v2457
        %v2530 = vpack.c.b16 %v2462, %v2458
        %v2531 = vpack.c.b16 %v2463, %v2459
        %v2532 = vpack.c.b16 %v2468, %v2464
        %v2533 = vpack.c.b16 %v2469, %v2465
        %v2534 = vpack.c.b16 %v2470, %v2466
        %v2535 = vpack.c.b16 %v2471, %v2467
        %2600 = vmatprep.subr.bf16.mxu0 %v2501
        %2601 = vmatpush1.bf16.msra.mxu0 %v2500
        %2602 = vmatprep.subr.bf16.mxu0 %v2497
        %2603 = vmatpush1.bf16.msra.mxu0 %v2496
        %2604 = vmatprep.subr.bf16.mxu0 %v2493
        %2605 = vmatpush1.bf16.msra.mxu0 %v2492
        %2606 = vmatprep.subr.bf16.mxu0 %v2489
        %2607 = vmatpush1.bf16.msra.mxu0 %v2488
        %2608 = vmatprep.subr.bf16.mxu0 %v2485
        %2609 = vmatpush1.bf16.msra.mxu0 %v2484
        %2610 = vmatprep.subr.bf16.mxu0 %v2481
        %2611 = vmatpush1.bf16.msra.mxu0 %v2480
        %2612 = vmatprep.subr.bf16.mxu0 %v2477
        %2613 = vmatpush1.bf16.msra.mxu0 %v2476
        %2614 = vmatprep.subr.bf16.mxu0 %v2473
        %2615 = vmatpush1.bf16.msra.mxu0 %v2472
        %2616 = vmatprep.subr.bf16.mxu0 %v2533
        %2617 = vmatpush2.bf16.msra.mxu0 %v2532
        %2618 = vmatprep.subr.bf16.mxu0 %v2529
        %2619 = vmatpush2.bf16.msra.mxu0 %v2528
        %2620 = vmatprep.subr.bf16.mxu0 %v2525
        %2621 = vmatpush2.bf16.msra.mxu0 %v2524
        %2622 = vmatprep.subr.bf16.mxu0 %v2521
        %2623 = vmatpush2.bf16.msra.mxu0 %v2520
        %2624 = vmatprep.subr.bf16.mxu0 %v2517
        %2625 = vmatpush2.bf16.msra.mxu0 %v2516
        %2626 = vmatprep.subr.bf16.mxu0 %v2513
        %2627 = vmatpush2.bf16.msra.mxu0 %v2512
        %2628 = vmatprep.subr.bf16.mxu0 %v2509
        %2629 = vmatpush2.bf16.msra.mxu0 %v2508
        %2630 = vmatprep.subr.bf16.mxu0 %v2505
        %2631 = vmatpush2.bf16.msra.mxu0 %v2504
        %2632 = vmatprep.mubr.bf16.mxu0 %v2277
        %2633 = vmatmul.mubr.bf16.gmra.mxu0 %v2276
        %v2634 = vpop.f32.mrf.mxu0
        %v2635 = vadd.f32 %v2256, %v2634
        %v2636 = vpop.f32.mrf.mxu0
        %v2637 = vadd.f32 %v2260, %v2636
        %v2638 = vpop.f32.mrf.mxu0
        %v2639 = vpop.f32.mrf.mxu0
        %2640 = vdwg.mxu0
        %2641 = vmatprep.subr.bf16.mxu0 %v2503
        %2642 = vmatpush1.bf16.msra.mxu0 %v2502
        %2643 = vmatprep.subr.bf16.mxu0 %v2499
        %2644 = vmatpush1.bf16.msra.mxu0 %v2498
        %2645 = vmatprep.subr.bf16.mxu0 %v2495
        %2646 = vmatpush1.bf16.msra.mxu0 %v2494
        %2647 = vmatprep.subr.bf16.mxu0 %v2491
        %2648 = vmatpush1.bf16.msra.mxu0 %v2490
        %2649 = vmatprep.subr.bf16.mxu0 %v2487
        %2650 = vmatpush1.bf16.msra.mxu0 %v2486
        %2651 = vmatprep.subr.bf16.mxu0 %v2483
        %2652 = vmatpush1.bf16.msra.mxu0 %v2482
        %2653 = vmatprep.subr.bf16.mxu0 %v2479
        %2654 = vmatpush1.bf16.msra.mxu0 %v2478
        %2655 = vmatprep.subr.bf16.mxu0 %v2475
        %2656 = vmatpush1.bf16.msra.mxu0 %v2474
        %2657 = vmatprep.subr.bf16.mxu0 %v2535
        %2658 = vmatpush2.bf16.msra.mxu0 %v2534
        %2659 = vmatprep.subr.bf16.mxu0 %v2531
        %2660 = vmatpush2.bf16.msra.mxu0 %v2530
        %2661 = vmatprep.subr.bf16.mxu0 %v2527
        %2662 = vmatpush2.bf16.msra.mxu0 %v2526
        %2663 = vmatprep.subr.bf16.mxu0 %v2523
        %2664 = vmatpush2.bf16.msra.mxu0 %v2522
        %2665 = vmatprep.subr.bf16.mxu0 %v2519
        %2666 = vmatpush2.bf16.msra.mxu0 %v2518
        %2667 = vmatprep.subr.bf16.mxu0 %v2515
        %2668 = vmatpush2.bf16.msra.mxu0 %v2514
        %2669 = vmatprep.subr.bf16.mxu0 %v2511
        %2670 = vmatpush2.bf16.msra.mxu0 %v2510
        %2671 = vmatprep.subr.bf16.mxu0 %v2507
        %2672 = vmatpush2.bf16.msra.mxu0 %v2506
        %2673 = vmatprep.mubr.bf16.mxu0 %v2277
        %2674 = vmatmul.mubr.bf16.gmra.mxu0 %v2276
        %v2675 = vpop.f32.mrf.mxu0
        %v2676 = vadd.f32 %v2264, %v2675
        %v2677 = vpop.f32.mrf.mxu0
        %v2678 = vadd.f32 %v2268, %v2677
        %v2679 = vpop.f32.mrf.mxu0
        %v2680 = vpop.f32.mrf.mxu0
        %2681 = vdwg.mxu0
        %v2682 = vmax.f32 %v2635, 0.0
        %v2683 = vmax.f32 %v2637, 0.0
        %v2684 = vmax.f32 %v2676, 0.0
        %v2685 = vmax.f32 %v2678, 0.0
        %v2686 = vpack.c.bf16 %v2682, %v2682
        %v2687 = vpack.c.bf16 %v2683, %v2683
        %v2688 = vpack.c.bf16 %v2684, %v2684
        %v2689 = vpack.c.bf16 %v2685, %v2685
        %2690 = vmatprep.subr.bf16.mxu0 0
        %2691 = vmatpush1.bf16.msra.mxu0 %v1029
        %2692 = vmatprep.subr.bf16.mxu0 0
        %2693 = vmatpush1.bf16.msra.mxu0 %v1028
        %2694 = vmatprep.subr.bf16.mxu0 0
        %2695 = vmatpush1.bf16.msra.mxu0 %v1027
        %2696 = vmatprep.subr.bf16.mxu0 0
        %2697 = vmatpush1.bf16.msra.mxu0 %v1026
        %2698 = vmatprep.subr.bf16.mxu0 0
        %2699 = vmatpush1.bf16.msra.mxu0 %v1025
        %2700 = vmatprep.subr.bf16.mxu0 0
        %2701 = vmatpush1.bf16.msra.mxu0 %v1024
        %2702 = vmatprep.subr.bf16.mxu0 0
        %2703 = vmatpush1.bf16.msra.mxu0 %v1023
        %2704 = vmatprep.subr.bf16.mxu0 0
        %2705 = vmatpush1.bf16.msra.mxu0 %v1022
        %2706 = vmatprep.subr.bf16.mxu0 0
        %2707 = vmatpush2.bf16.msra.mxu0 %v1037
        %2708 = vmatprep.subr.bf16.mxu0 0
        %2709 = vmatpush2.bf16.msra.mxu0 %v1036
        %2710 = vmatprep.subr.bf16.mxu0 0
        %2711 = vmatpush2.bf16.msra.mxu0 %v1035
        %2712 = vmatprep.subr.bf16.mxu0 0
        %2713 = vmatpush2.bf16.msra.mxu0 %v1034
        %2714 = vmatprep.subr.bf16.mxu0 0
        %2715 = vmatpush2.bf16.msra.mxu0 %v1033
        %2716 = vmatprep.subr.bf16.mxu0 0
        %2717 = vmatpush2.bf16.msra.mxu0 %v1032
        %2718 = vmatprep.subr.bf16.mxu0 0
        %2719 = vmatpush2.bf16.msra.mxu0 %v1031
        %2720 = vmatprep.subr.bf16.mxu0 0
        %2721 = vmatpush2.bf16.msra.mxu0 %v1030
        %2722 = vmatprep.mubr.bf16.mxu0 %v2687
        %2723 = vmatmul.mubr.bf16.gmra.mxu0 %v2686
        %v2724 = vpop.f32.mrf.mxu0
        %v2725 = vadd.f32 %v892, %v2724
        %v2726 = vpop.f32.mrf.mxu0
        %v2727 = vpop.f32.mrf.mxu0
        %v2728 = vpop.f32.mrf.mxu0
        %2729 = vdwg.mxu0
        %2730 = vmatprep.subr.bf16.mxu0 0
        %2731 = vmatpush1.bf16.msra.mxu0 %v1045
        %2732 = vmatprep.subr.bf16.mxu0 0
        %2733 = vmatpush1.bf16.msra.mxu0 %v1044
        %2734 = vmatprep.subr.bf16.mxu0 0
        %2735 = vmatpush1.bf16.msra.mxu0 %v1043
        %2736 = vmatprep.subr.bf16.mxu0 0
        %2737 = vmatpush1.bf16.msra.mxu0 %v1042
        %2738 = vmatprep.subr.bf16.mxu0 0
        %2739 = vmatpush1.bf16.msra.mxu0 %v1041
        %2740 = vmatprep.subr.bf16.mxu0 0
        %2741 = vmatpush1.bf16.msra.mxu0 %v1040
        %2742 = vmatprep.subr.bf16.mxu0 0
        %2743 = vmatpush1.bf16.msra.mxu0 %v1039
        %2744 = vmatprep.subr.bf16.mxu0 0
        %2745 = vmatpush1.bf16.msra.mxu0 %v1038
        %2746 = vmatprep.subr.bf16.mxu0 0
        %2747 = vmatpush2.bf16.msra.mxu0 %v1053
        %2748 = vmatprep.subr.bf16.mxu0 0
        %2749 = vmatpush2.bf16.msra.mxu0 %v1052
        %2750 = vmatprep.subr.bf16.mxu0 0
        %2751 = vmatpush2.bf16.msra.mxu0 %v1051
        %2752 = vmatprep.subr.bf16.mxu0 0
        %2753 = vmatpush2.bf16.msra.mxu0 %v1050
        %2754 = vmatprep.subr.bf16.mxu0 0
        %2755 = vmatpush2.bf16.msra.mxu0 %v1049
        %2756 = vmatprep.subr.bf16.mxu0 0
        %2757 = vmatpush2.bf16.msra.mxu0 %v1048
        %2758 = vmatprep.subr.bf16.mxu0 0
        %2759 = vmatpush2.bf16.msra.mxu0 %v1047
        %2760 = vmatprep.subr.bf16.mxu0 0
        %2761 = vmatpush2.bf16.msra.mxu0 %v1046
        %2762 = vmatprep.mubr.bf16.mxu0 %v2689
        %2763 = vmatmul.mubr.bf16.gmra.mxu0 %v2688
        %v2764 = vpop.f32.mrf.mxu0
        %v2765 = vadd.f32 %v2725, %v2764
        %v2766 = vpop.f32.mrf.mxu0
        %v2767 = vpop.f32.mrf.mxu0
        %v2768 = vpop.f32.mrf.mxu0
        %2769 = vdwg.mxu0
        %v2770 = vmax.f32 %v2765, 0.0
        %v2771 = vpack.c.bf16 %v2770, %v2770
        %2772 = vmatprep.subr.bf16.mxu0 0
        %2773 = vmatpush1.bf16.msra.mxu0 %v1230
        %2774 = vmatprep.subr.bf16.mxu0 0
        %2775 = vmatpush1.bf16.msra.mxu0 %v1229
        %2776 = vmatprep.subr.bf16.mxu0 0
        %2777 = vmatpush1.bf16.msra.mxu0 %v1228
        %2778 = vmatprep.subr.bf16.mxu0 0
        %2779 = vmatpush1.bf16.msra.mxu0 %v1227
        %2780 = vmatprep.subr.bf16.mxu0 0
        %2781 = vmatpush1.bf16.msra.mxu0 %v1226
        %2782 = vmatprep.subr.bf16.mxu0 0
        %2783 = vmatpush1.bf16.msra.mxu0 %v1225
        %2784 = vmatprep.subr.bf16.mxu0 0
        %2785 = vmatpush1.bf16.msra.mxu0 %v1224
        %2786 = vmatprep.subr.bf16.mxu0 0
        %2787 = vmatpush1.bf16.msra.mxu0 %v1223
        %2788 = vmatprep.subr.bf16.mxu0 0
        %2789 = vmatpush2.bf16.msra.mxu0 0
        %2790 = vmatprep.subr.bf16.mxu0 0
        %2791 = vmatpush2.bf16.msra.mxu0 0
        %2792 = vmatprep.subr.bf16.mxu0 0
        %2793 = vmatpush2.bf16.msra.mxu0 0
        %2794 = vmatprep.subr.bf16.mxu0 0
        %2795 = vmatpush2.bf16.msra.mxu0 0
        %2796 = vmatprep.subr.bf16.mxu0 0
        %2797 = vmatpush2.bf16.msra.mxu0 0
        %2798 = vmatprep.subr.bf16.mxu0 0
        %2799 = vmatpush2.bf16.msra.mxu0 0
        %2800 = vmatprep.subr.bf16.mxu0 0
        %2801 = vmatpush2.bf16.msra.mxu0 0
        %2802 = vmatprep.subr.bf16.mxu0 0
        %2803 = vmatpush2.bf16.msra.mxu0 0
        %2804 = vmatprep.mubr.bf16.mxu0 0
        %2805 = vmatmul.mubr.bf16.gmra.mxu0 %v2771
        %v2806 = vpop.f32.mrf.mxu0
        %v2807 = vadd.f32 %v1189, %v2806
        %v2808 = vpop.f32.mrf.mxu0
        %v2809 = vpop.f32.mrf.mxu0
        %v2810 = vpop.f32.mrf.mxu0
        %2811 = vdwg.mxu0
        %v2812 = vmax.f32 %v2807, 0.0
        %v2813 = vmul.f32 %v1279, %v2185
        %2814 = vadd.xlane.f32.xlu0 %v2813
        %v2815 = vpop.xlane.xlu0 %2814
        %v2816 = vmul.f32 %v2185, %v2812
        %2817 = vadd.xlane.f32.xlu0 %v2816
        %v2818 = vpop.xlane.xlu0 %2817
        %v2819 = vmul.f32 %v2812, %v1279
        %2820 = vadd.xlane.f32.xlu0 %v2819
        %v2821 = vpop.xlane.xlu0 %2820
        %s2822 = sld [smem:[#allocation2]]
        %v2823 = vstv %s2822
        %v2824 = vmul.f32 %v2815, %v2823
        %s2825 = sld [smem:[#allocation2 + $0x1]]
        %v2826 = vstv %s2825
        %v2827 = vmul.f32 %v2818, %v2826
        %v2828 = vadd.f32 %v2824, %v2827
        %s2829 = sld [smem:[#allocation2 + $0x2]]
        %v2830 = vstv %s2829
        %v2831 = vmul.f32 %v2821, %v2830
        %v2832 = vadd.f32 %v2828, %v2831
        %s2833 = sld [smem:[#allocation2 + $0x3]]
        %v2834 = vstv %s2833
        %v2835 = vadd.f32 %v2832, %v2834
        %vm2836 = vcmask 7168
        %2837 = vst.msk [vmem:[%s516] sm:$0xff] %vm2836, %v2835
        %p2838 = scmp.lt.s32.totalorder %s26, 3
        %s2839 = scalar_select %p2838, %s26, 3
        %s2840 = smul.addr %s2839, 8
        %s2841 = scalar_lea.vmem %s14, %s2840
        // Predicated region
        $region81: #{dnn_feature_dot.1} parent=75 // pred_check
          %p2842 = pneg %p353
        $region82: #{dnn_feature_dot.1} parent=75 // pred_check_branch
          %2844 = sbr.rel (%p2842) target = $region84
        $region83: #{dnn_feature_dot.1} parent=75 // pred_region
          _
        $region84: #{dnn_feature_dot.1} parent=75 // pred_fallthru
          _
      $region76: #{dnn_feature_dot.1} parent=5 // pred_fallthru
        _
      %p2845 = scmp.le.s32.totalorder 2, %s21
      // Predicated region
      $region85: #{dnn_feature_dot.1} parent=5 // pred_check
        %p2846 = pneg %p2845
      $region86: #{dnn_feature_dot.1} parent=5 // pred_check_branch
        %2848 = sbr.rel (%p2846) target = $region88
      $region87: #{dnn_feature_dot.1} parent=5 // pred_region
        %s2849 = ssub.s32 %s21, 2
        // Predicated region
        $region89: #{dnn_feature_dot.1} parent=87 // pred_check
          %p2850 = pneg %p359
        $region90: #{dnn_feature_dot.1} parent=87 // pred_check_branch
          %2852 = sbr.rel (%p2850) target = $region92
        $region91: #{dnn_feature_dot.1} parent=87 // pred_region
          %p2853 = scmp.lt.s32.totalorder %s27, 3
          %s2854 = scalar_select %p2853, %s27, 3
          %s2855 = smul.addr %s2854, 8
          %s2856 = scalar_lea.vmem %s14, %s2855
        $region92: #{dnn_feature_dot.1} parent=87 // pred_fallthru
          _
      $region88: #{dnn_feature_dot.1} parent=5 // pred_fallthru
        _
    $region6: #{dnn_feature_dot.1} parent=1 // loop_footer
      %s25 = sadd.s32 1, %s21
    $region7: #{dnn_feature_dot.1} parent=1 // loop_footer_branch
      %20 = sbr.rel target = $region3
    $region8: #{dnn_feature_dot.1} parent=1 // loop_exit
      _
    %2857 = vsyncpa [#allocation3], 1
    %s2858 = scalar_lea.sflag [#allocation3], 1
    %2859 = vsyncpa %s2858, 1

</llo_original>
